<compile_context>
chip_gen: v5e
topology: v5e:2x2
jax: 0.10.0
libtpu: 0.0.40
codegen_flags: <defaults>
</compile_context>

<pallas_src>
import math

import jax
import jax.numpy as jnp
from jax import lax
from jax.experimental import pallas as pl
from jax.experimental.pallas import tpu as pltpu

# ---------------- small shapes consistent with the module --------------------
BATCH = 2
SEQ = 64
IN_FEATURES = 128
HIDDEN_FEATURES = 256
OUT_FEATURES = 128


def _pick_row_tile(m: int) -> int:
    """Rows per grid step: collapse to one step at small M, 256-512 otherwise."""
    if m <= 512:
        return m
    for cand in (512, 384, 256, 128, 64, 32, 16, 8):
        if m % cand == 0:
            return cand
    return m  # last resort: single step


# ---------------- kernel ------------------------------------------------------
def mlp_kernel(x_ref, w1_ref, b1_ref, w2_ref, b2_ref, o_ref):
    # x_ref:  (TM, D_in)
    # w1_ref: (D_in, H)   pre-transposed, MXU-natural (K, N) weight-stationary
    # b1_ref: (1, H)
    # w2_ref: (H, D_out)  pre-transposed
    # b2_ref: (1, D_out)
    x = x_ref[...]

    # fc1: canonical (M,K)x(K,N) contraction on the MXU.
    h = jnp.dot(x, w1_ref[...], preferred_element_type=jnp.float32) + b1_ref[...]

    # exact (erf-based) GELU in f32, matching nn.GELU()
    h = 0.5 * h * (1.0 + lax.erf(h * (1.0 / math.sqrt(2.0))))

    # fc2
    y = jnp.dot(h, w2_ref[...], preferred_element_type=jnp.float32) + b2_ref[...]

    o_ref[...] = y


# ---------------- wrapper -----------------------------------------------------
def mlp_forward(x, params):
    """x: (B, N, D_in) float32 -> (B, N, D_out) float32."""
    B, N, D_in = x.shape
    H = params['fc1_w'].shape[0]
    D_out = params['fc2_w'].shape[0]
    M = B * N

    row_tile = _pick_row_tile(M)
    assert M % row_tile == 0, (M, row_tile)
    # TODO(synk): arbitrary sequence lengths need padding or a masked last tile.

    x2 = x.reshape(M, D_in)                        # lane-dense tokens-x-channels
    # One-time transpose to (in, out): removes per-step XLU work in the kernel.
    w1_t = params['fc1_w'].T                       # (D_in, H)
    w2_t = params['fc2_w'].T                       # (H, D_out)
    b1 = params['fc1_b'].reshape(1, H)
    b2 = params['fc2_b'].reshape(1, D_out)

    flops = 2 * M * (D_in * H + H * D_out)
    bytes_accessed = 4 * (M * D_in + D_in * H + H + H * D_out + D_out + M * D_out)
    cost = pl.CostEstimate(flops=flops,
                           transcendentals=M * H,
                           bytes_accessed=bytes_accessed)

    out2 = pl.pallas_call(
        mlp_kernel,
        out_shape=jax.ShapeDtypeStruct((M, D_out), jnp.float32),
        grid=(M // row_tile,),
        in_specs=[
            pl.BlockSpec((row_tile, D_in), lambda i: (i, 0)),   # x row tile
            pl.BlockSpec((D_in, H), lambda i: (0, 0)),          # w1^T (resident)
            pl.BlockSpec((1, H), lambda i: (0, 0)),             # b1
            pl.BlockSpec((H, D_out), lambda i: (0, 0)),         # w2^T (resident)
            pl.BlockSpec((1, D_out), lambda i: (0, 0)),         # b2
        ],
        out_specs=pl.BlockSpec((row_tile, D_out), lambda i: (i, 0)),
        compiler_params=pltpu.CompilerParams(
            dimension_semantics=("parallel",)),
        cost_estimate=cost,
    )(x2, w1_t, b1, w2_t, b2)

    return out2.reshape(B, N, D_out)


# ---------------- reference & init --------------------------------------------
def mlp_reference(x, params):
    h = x @ params['fc1_w'].T + params['fc1_b']
    h = jax.nn.gelu(h, approximate=False)
    return h @ params['fc2_w'].T + params['fc2_b']


def init_params(key):
    k1, k2, k3, k4 = jax.random.split(key, 4)
    std = 0.02
    return {
        # PyTorch nn.Linear convention: weight is (out_features, in_features)
        'fc1_w': (std * jax.random.normal(k1, (HIDDEN_FEATURES, IN_FEATURES))
                  ).astype(jnp.float32),
        'fc1_b': (std * jax.random.normal(k2, (HIDDEN_FEATURES,))
                  ).astype(jnp.float32),
        'fc2_w': (std * jax.random.normal(k3, (OUT_FEATURES, HIDDEN_FEATURES))
                  ).astype(jnp.float32),
        'fc2_b': (std * jax.random.normal(k4, (OUT_FEATURES,))
                  ).astype(jnp.float32),
    }


if __name__ == "__main__":
    key = jax.random.PRNGKey(0)
    pkey, xkey = jax.random.split(key)
    params = init_params(pkey)
    x = jax.random.normal(xkey, (BATCH, SEQ, IN_FEATURES), jnp.float32)

    out = jax.jit(mlp_forward)(x, params)
    out = jax.block_until_ready(out)

    assert out.shape == (BATCH, SEQ, OUT_FEATURES), out.shape
    ref = mlp_reference(x, params)
    assert bool(jnp.all(jnp.isfinite(out)))
    assert bool(jnp.allclose(out, ref, rtol=1e-4, atol=1e-4))
    print("KERNEL_OK")
</pallas_src>

<mosaic_0001>
module attributes {stable_mosaic.version = 11 : i64} {
  func.func @mlp_kernel(%arg0: i32, %arg1: memref<128x128xf32, #tpu.memory_space<vmem>>, %arg2: memref<128x256xf32, #tpu.memory_space<vmem>>, %arg3: memref<1x256xf32, #tpu.memory_space<vmem>>, %arg4: memref<256x128xf32, #tpu.memory_space<vmem>>, %arg5: memref<1x128xf32, #tpu.memory_space<vmem>>, %arg6: memref<128x128xf32, #tpu.memory_space<vmem>>) attributes {dimension_semantics = [#tpu.dimension_semantics<parallel>], iteration_bounds = array<i64: 1>, scalar_prefetch = 0 : i64, scratch_operands = 0 : i64, tpu.core_type = #tpu.core_type<tc>, window_params = [{transform_indices = @transform_0, window_bounds = array<i64: 128, 128>}, {pipeline_mode = #tpu.pipeline_mode<synchronous>, transform_indices = @transform_1, window_bounds = array<i64: 128, 256>}, {pipeline_mode = #tpu.pipeline_mode<synchronous>, transform_indices = @transform_2, window_bounds = array<i64: 1, 256>}, {pipeline_mode = #tpu.pipeline_mode<synchronous>, transform_indices = @transform_3, window_bounds = array<i64: 256, 128>}, {pipeline_mode = #tpu.pipeline_mode<synchronous>, transform_indices = @transform_4, window_bounds = array<i64: 1, 128>}, {transform_indices = @transform_5, window_bounds = array<i64: 128, 128>}]} {
    %c0 = arith.constant 0 : index
    %c0_0 = arith.constant 0 : index
    %0 = vector.load %arg1[%c0, %c0_0] : memref<128x128xf32, #tpu.memory_space<vmem>>, vector<128x128xf32>
    %c0_1 = arith.constant 0 : index
    %c0_2 = arith.constant 0 : index
    %1 = vector.load %arg2[%c0_1, %c0_2] : memref<128x256xf32, #tpu.memory_space<vmem>>, vector<128x256xf32>
    %cst = arith.constant dense<0.000000e+00> : vector<128x256xf32>
    %2 = tpu.matmul %0, %1, %cst {dimension_numbers = #tpu.dot_dimension_numbers<[1], [0], [0], [1], [0, 0, 1, 1], [], []>} : vector<128x128xf32>, vector<128x256xf32>, vector<128x256xf32> -> vector<128x256xf32>
    %c0_3 = arith.constant 0 : index
    %c0_4 = arith.constant 0 : index
    %3 = vector.load %arg3[%c0_3, %c0_4] : memref<1x256xf32, #tpu.memory_space<vmem>>, vector<1x256xf32>
    %4 = vector.broadcast %3 : vector<1x256xf32> to vector<128x256xf32>
    %5 = arith.addf %2, %4 : vector<128x256xf32>
    %cst_5 = arith.constant 5.000000e-01 : f32
    %6 = vector.broadcast %cst_5 : f32 to vector<128x256xf32>
    %7 = arith.mulf %6, %5 : vector<128x256xf32>
    %cst_6 = arith.constant 0.707106769 : f32
    %8 = vector.broadcast %cst_6 : f32 to vector<128x256xf32>
    %9 = arith.mulf %5, %8 : vector<128x256xf32>
    %10 = math.erf %9 : vector<128x256xf32>
    %cst_7 = arith.constant 1.000000e+00 : f32
    %11 = vector.broadcast %cst_7 : f32 to vector<128x256xf32>
    %12 = arith.addf %11, %10 : vector<128x256xf32>
    %13 = arith.mulf %7, %12 : vector<128x256xf32>
    %c0_8 = arith.constant 0 : index
    %c0_9 = arith.constant 0 : index
    %14 = vector.load %arg4[%c0_8, %c0_9] : memref<256x128xf32, #tpu.memory_space<vmem>>, vector<256x128xf32>
    %cst_10 = arith.constant dense<0.000000e+00> : vector<128x128xf32>
    %15 = tpu.matmul %13, %14, %cst_10 {dimension_numbers = #tpu.dot_dimension_numbers<[1], [0], [0], [1], [0, 0, 1, 1], [], []>} : vector<128x256xf32>, vector<256x128xf32>, vector<128x128xf32> -> vector<128x128xf32>
    %c0_11 = arith.constant 0 : index
    %c0_12 = arith.constant 0 : index
    %16 = vector.load %arg5[%c0_11, %c0_12] : memref<1x128xf32, #tpu.memory_space<vmem>>, vector<1x128xf32>
    %17 = vector.broadcast %16 : vector<1x128xf32> to vector<128x128xf32>
    %18 = arith.addf %15, %17 : vector<128x128xf32>
    %c0_13 = arith.constant 0 : index
    %c0_14 = arith.constant 0 : index
    %19 = vector.load %arg6[%c0_13, %c0_14] : memref<128x128xf32, #tpu.memory_space<vmem>>, vector<128x128xf32>
    tpu.vector_store %arg6[%c0_13, %c0_14], %18 {strides = array<i32>} : memref<128x128xf32, #tpu.memory_space<vmem>>, vector<128x128xf32>,
    return
  }
  func.func @transform_0(%arg0: i32) -> (i32, i32) {
    %c0_i32 = arith.constant 0 : i32
    %c0_i32_0 = arith.constant 0 : i32
    return %arg0, %c0_i32 : i32, i32
  }
  func.func @transform_1(%arg0: i32) -> (i32, i32) {
    %c0_i32 = arith.constant 0 : i32
    %c0_i32_0 = arith.constant 0 : i32
    %c0_i32_1 = arith.constant 0 : i32
    return %c0_i32, %c0_i32_0 : i32, i32
  }
  func.func @transform_2(%arg0: i32) -> (i32, i32) {
    %c0_i32 = arith.constant 0 : i32
    %c0_i32_0 = arith.constant 0 : i32
    %c0_i32_1 = arith.constant 0 : i32
    return %c0_i32, %c0_i32_0 : i32, i32
  }
  func.func @transform_3(%arg0: i32) -> (i32, i32) {
    %c0_i32 = arith.constant 0 : i32
    %c0_i32_0 = arith.constant 0 : i32
    %c0_i32_1 = arith.constant 0 : i32
    return %c0_i32, %c0_i32_0 : i32, i32
  }
  func.func @transform_4(%arg0: i32) -> (i32, i32) {
    %c0_i32 = arith.constant 0 : i32
    %c0_i32_0 = arith.constant 0 : i32
    %c0_i32_1 = arith.constant 0 : i32
    return %c0_i32, %c0_i32_0 : i32, i32
  }
  func.func @transform_5(%arg0: i32) -> (i32, i32) {
    %c0_i32 = arith.constant 0 : i32
    %c0_i32_0 = arith.constant 0 : i32
    return %arg0, %c0_i32 : i32, i32
  }
}

</mosaic_0001>

<llo_original>
// kernel: mlp_forward.1
$region0: #{mlp_forward.1}
  #allocation0 [shape = 'u32[]', space=smem, size = 0x4, offset = 0x4, fixed_abs, tag = 'smem constant byte address 0x4 - core index']
  #allocation1 [shape = 'u32[72,128]{1,0:T(1,128)}', space=vmem, size = 0x9000, scoped, tag = 'internal scratch']
  %s0 = inlined_call_operand.vmem [shape: f32[128,128], index: 0, kind: input, shape index: {}]
  %s1 = inlined_call_operand.vmem [shape: f32[128,256], index: 1, kind: input, shape index: {}]
  %s2 = inlined_call_operand.vmem [shape: f32[1,256], index: 2, kind: input, shape index: {}]
  %s3 = inlined_call_operand.vmem [shape: f32[256,128], index: 3, kind: input, shape index: {}]
  %s4 = inlined_call_operand.vmem [shape: f32[1,128], index: 4, kind: input, shape index: {}]
  %s5 = inlined_call_operand.hbm [shape: f32[128,128], index: 5, kind: output, shape index: {}]
  %s6 = sld [smem:[#allocation0]]
  $region30: #{mlp_forward.1} parent=0
    _
  %s8 = ssub.s32 1, %s6
  %s9 = scalar_select 0, %s8, %s6
  $region1: #{mlp_forward.1} parent=0
    #allocation2 [shape = 'u8[65536]{0}', space=vmem, size = 0x10000, scoped, tag = 'output window, operand 0, single buffered']
    #allocation3 [shape = 's32[1]{0}', space=sflag, size = 0x4, scoped, tag = 'scoped memory for mlp_forward.1']
    %10 = vsyncpa [#allocation3], 0
    // Predicated region
    $region2: #{mlp_forward.1} parent=1 // pred_check
      _
    $region3: #{mlp_forward.1} parent=1 // pred_check_branch
      %12 = sbr.rel (0) target = $region5
    $region4: #{mlp_forward.1} parent=1 // pred_region
      _
    $region5: #{mlp_forward.1} parent=1 // pred_fallthru
      _
    // Predicated region
    $region6: #{mlp_forward.1} parent=1 // pred_check
      _
    $region7: #{mlp_forward.1} parent=1 // pred_check_branch
      %14 = sbr.rel (0) target = $region9
    $region8: #{mlp_forward.1} parent=1 // pred_region
      _
    $region9: #{mlp_forward.1} parent=1 // pred_fallthru
      _
    // Predicated region
    $region10: #{mlp_forward.1} parent=1 // pred_check
      _
    $region11: #{mlp_forward.1} parent=1 // pred_check_branch
      %16 = sbr.rel (0) target = $region13
    $region12: #{mlp_forward.1} parent=1 // pred_region
      _
    $region13: #{mlp_forward.1} parent=1 // pred_fallthru
      _
    // Predicated region
    $region14: #{mlp_forward.1} parent=1 // pred_check
      _
    $region15: #{mlp_forward.1} parent=1 // pred_check_branch
      %18 = sbr.rel (0) target = $region17
    $region16: #{mlp_forward.1} parent=1 // pred_region
      _
    $region17: #{mlp_forward.1} parent=1 // pred_fallthru
      _
    // Predicated region
    $region18: #{mlp_forward.1} parent=1 // pred_check
      _
    $region19: #{mlp_forward.1} parent=1 // pred_check_branch
      %20 = sbr.rel (0) target = $region21
    $region20: #{mlp_forward.1} parent=1 // pred_region
      _
    $region21: #{mlp_forward.1} parent=1 // pred_fallthru
      _
    %v21 = vld [vmem:[%s0] sm:$0xff]
    %v22 = vld [vmem:[%s0 + $0x8] sm:$0xff]
    %v23 = vld [vmem:[%s0 + $0x10] sm:$0xff]
    %v24 = vld [vmem:[%s0 + $0x18] sm:$0xff]
    %v25 = vld [vmem:[%s0 + $0x20] sm:$0xff]
    %v26 = vld [vmem:[%s0 + $0x28] sm:$0xff]
    %v27 = vld [vmem:[%s0 + $0x30] sm:$0xff]
    %v28 = vld [vmem:[%s0 + $0x38] sm:$0xff]
    %v29 = vld [vmem:[%s0 + $0x40] sm:$0xff]
    %v30 = vld [vmem:[%s0 + $0x48] sm:$0xff]
    %v31 = vld [vmem:[%s0 + $0x50] sm:$0xff]
    %v32 = vld [vmem:[%s0 + $0x58] sm:$0xff]
    %v33 = vld [vmem:[%s0 + $0x60] sm:$0xff]
    %v34 = vld [vmem:[%s0 + $0x68] sm:$0xff]
    %v35 = vld [vmem:[%s0 + $0x70] sm:$0xff]
    %v36 = vld [vmem:[%s0 + $0x78] sm:$0xff]
    %v37 = vld [vmem:[%s1] sm:$0xff]
    %v38 = vld [vmem:[%s1 + $0x8] sm:$0xff]
    %v39 = vld [vmem:[%s1 + $0x10] sm:$0xff]
    %v40 = vld [vmem:[%s1 + $0x18] sm:$0xff]
    %v41 = vld [vmem:[%s1 + $0x20] sm:$0xff]
    %v42 = vld [vmem:[%s1 + $0x28] sm:$0xff]
    %v43 = vld [vmem:[%s1 + $0x30] sm:$0xff]
    %v44 = vld [vmem:[%s1 + $0x38] sm:$0xff]
    %v45 = vld [vmem:[%s1 + $0x40] sm:$0xff]
    %v46 = vld [vmem:[%s1 + $0x48] sm:$0xff]
    %v47 = vld [vmem:[%s1 + $0x50] sm:$0xff]
    %v48 = vld [vmem:[%s1 + $0x58] sm:$0xff]
    %v49 = vld [vmem:[%s1 + $0x60] sm:$0xff]
    %v50 = vld [vmem:[%s1 + $0x68] sm:$0xff]
    %v51 = vld [vmem:[%s1 + $0x70] sm:$0xff]
    %v52 = vld [vmem:[%s1 + $0x78] sm:$0xff]
    %v53 = vld [vmem:[%s1 + $0x80] sm:$0xff]
    %v54 = vld [vmem:[%s1 + $0x88] sm:$0xff]
    %v55 = vld [vmem:[%s1 + $0x90] sm:$0xff]
    %v56 = vld [vmem:[%s1 + $0x98] sm:$0xff]
    %v57 = vld [vmem:[%s1 + $0xa0] sm:$0xff]
    %v58 = vld [vmem:[%s1 + $0xa8] sm:$0xff]
    %v59 = vld [vmem:[%s1 + $0xb0] sm:$0xff]
    %v60 = vld [vmem:[%s1 + $0xb8] sm:$0xff]
    %v61 = vld [vmem:[%s1 + $0xc0] sm:$0xff]
    %v62 = vld [vmem:[%s1 + $0xc8] sm:$0xff]
    %v63 = vld [vmem:[%s1 + $0xd0] sm:$0xff]
    %v64 = vld [vmem:[%s1 + $0xd8] sm:$0xff]
    %v65 = vld [vmem:[%s1 + $0xe0] sm:$0xff]
    %v66 = vld [vmem:[%s1 + $0xe8] sm:$0xff]
    %v67 = vld [vmem:[%s1 + $0xf0] sm:$0xff]
    %v68 = vld [vmem:[%s1 + $0xf8] sm:$0xff]
    %v69 = vld [vmem:[%s2] sm:$0x3]
    %v71 = vperm.slane %v69, 0
    %v72 = vperm.slane %v69, 1
    %75 = vmatpush.msra.mxu0 %v67
    %76 = vmatpush.msra.mxu0 %v65
    %77 = vmatpush.msra.mxu0 %v63
    %78 = vmatpush.msra.mxu0 %v61
    %79 = vmatpush.msra.mxu0 %v59
    %80 = vmatpush.msra.mxu0 %v57
    %81 = vmatpush.msra.mxu0 %v55
    %82 = vmatpush.msra.mxu0 %v53
    %83 = vmatpush.msra.mxu0 %v51
    %84 = vmatpush.msra.mxu0 %v49
    %85 = vmatpush.msra.mxu0 %v47
    %86 = vmatpush.msra.mxu0 %v45
    %87 = vmatpush.msra.mxu0 %v43
    %88 = vmatpush.msra.mxu0 %v41
    %89 = vmatpush.msra.mxu0 %v39
    %90 = vmatpush.msra.mxu0 %v37
    %91 = vmatmul.f32.gmra.mxu0 %v21
    %v92 = vpop.f32.mrf.mxu0
    %v93 = vadd.f32 %v71, %v92
    %94 = vmatmul.f32.gmra.mxu0 %v22
    %v95 = vpop.f32.mrf.mxu0
    %v96 = vadd.f32 %v71, %v95
    %97 = vmatmul.f32.gmra.mxu0 %v23
    %v98 = vpop.f32.mrf.mxu0
    %v99 = vadd.f32 %v71, %v98
    %100 = vmatmul.f32.gmra.mxu0 %v24
    %v101 = vpop.f32.mrf.mxu0
    %v102 = vadd.f32 %v71, %v101
    %103 = vmatmul.f32.gmra.mxu0 %v25
    %v104 = vpop.f32.mrf.mxu0
    %v105 = vadd.f32 %v71, %v104
    %106 = vmatmul.f32.gmra.mxu0 %v26
    %v107 = vpop.f32.mrf.mxu0
    %v108 = vadd.f32 %v71, %v107
    %109 = vmatmul.f32.gmra.mxu0 %v27
    %v110 = vpop.f32.mrf.mxu0
    %v111 = vadd.f32 %v71, %v110
    %112 = vmatmul.f32.gmra.mxu0 %v28
    %v113 = vpop.f32.mrf.mxu0
    %v114 = vadd.f32 %v71, %v113
    %115 = vmatmul.f32.gmra.mxu0 %v29
    %v116 = vpop.f32.mrf.mxu0
    %v117 = vadd.f32 %v71, %v116
    %118 = vmatmul.f32.gmra.mxu0 %v30
    %v119 = vpop.f32.mrf.mxu0
    %v120 = vadd.f32 %v71, %v119
    %121 = vmatmul.f32.gmra.mxu0 %v31
    %v122 = vpop.f32.mrf.mxu0
    %v123 = vadd.f32 %v71, %v122
    %124 = vmatmul.f32.gmra.mxu0 %v32
    %v125 = vpop.f32.mrf.mxu0
    %v126 = vadd.f32 %v71, %v125
    %127 = vmatmul.f32.gmra.mxu0 %v33
    %v128 = vpop.f32.mrf.mxu0
    %v129 = vadd.f32 %v71, %v128
    %130 = vmatmul.f32.gmra.mxu0 %v34
    %v131 = vpop.f32.mrf.mxu0
    %v132 = vadd.f32 %v71, %v131
    %133 = vmatmul.f32.gmra.mxu0 %v35
    %v134 = vpop.f32.mrf.mxu0
    %v135 = vadd.f32 %v71, %v134
    %136 = vmatmul.f32.gmra.mxu0 %v36
    %v137 = vpop.f32.mrf.mxu0
    %v138 = vadd.f32 %v71, %v137
    %139 = vdwg.mxu0
    %140 = vmatpush.msra.mxu0 %v68
    %141 = vmatpush.msra.mxu0 %v66
    %142 = vmatpush.msra.mxu0 %v64
    %143 = vmatpush.msra.mxu0 %v62
    %144 = vmatpush.msra.mxu0 %v60
    %145 = vmatpush.msra.mxu0 %v58
    %146 = vmatpush.msra.mxu0 %v56
    %147 = vmatpush.msra.mxu0 %v54
    %148 = vmatpush.msra.mxu0 %v52
    %149 = vmatpush.msra.mxu0 %v50
    %150 = vmatpush.msra.mxu0 %v48
    %151 = vmatpush.msra.mxu0 %v46
    %152 = vmatpush.msra.mxu0 %v44
    %153 = vmatpush.msra.mxu0 %v42
    %154 = vmatpush.msra.mxu0 %v40
    %155 = vmatpush.msra.mxu0 %v38
    %156 = vmatmul.f32.gmra.mxu0 %v21
    %v157 = vpop.f32.mrf.mxu0
    %v158 = vadd.f32 %v72, %v157
    %159 = vmatmul.f32.gmra.mxu0 %v22
    %v160 = vpop.f32.mrf.mxu0
    %v161 = vadd.f32 %v72, %v160
    %162 = vmatmul.f32.gmra.mxu0 %v23
    %v163 = vpop.f32.mrf.mxu0
    %v164 = vadd.f32 %v72, %v163
    %165 = vmatmul.f32.gmra.mxu0 %v24
    %v166 = vpop.f32.mrf.mxu0
    %v167 = vadd.f32 %v72, %v166
    %168 = vmatmul.f32.gmra.mxu0 %v25
    %v169 = vpop.f32.mrf.mxu0
    %v170 = vadd.f32 %v72, %v169
    %171 = vmatmul.f32.gmra.mxu0 %v26
    %v172 = vpop.f32.mrf.mxu0
    %v173 = vadd.f32 %v72, %v172
    %174 = vmatmul.f32.gmra.mxu0 %v27
    %v175 = vpop.f32.mrf.mxu0
    %v176 = vadd.f32 %v72, %v175
    %177 = vmatmul.f32.gmra.mxu0 %v28
    %v178 = vpop.f32.mrf.mxu0
    %v179 = vadd.f32 %v72, %v178
    %180 = vmatmul.f32.gmra.mxu0 %v29
    %v181 = vpop.f32.mrf.mxu0
    %v182 = vadd.f32 %v72, %v181
    %183 = vmatmul.f32.gmra.mxu0 %v30
    %v184 = vpop.f32.mrf.mxu0
    %v185 = vadd.f32 %v72, %v184
    %186 = vmatmul.f32.gmra.mxu0 %v31
    %v187 = vpop.f32.mrf.mxu0
    %v188 = vadd.f32 %v72, %v187
    %189 = vmatmul.f32.gmra.mxu0 %v32
    %v190 = vpop.f32.mrf.mxu0
    %v191 = vadd.f32 %v72, %v190
    %192 = vmatmul.f32.gmra.mxu0 %v33
    %v193 = vpop.f32.mrf.mxu0
    %v194 = vadd.f32 %v72, %v193
    %195 = vmatmul.f32.gmra.mxu0 %v34
    %v196 = vpop.f32.mrf.mxu0
    %v197 = vadd.f32 %v72, %v196
    %198 = vmatmul.f32.gmra.mxu0 %v35
    %v199 = vpop.f32.mrf.mxu0
    %v200 = vadd.f32 %v72, %v199
    %201 = vmatmul.f32.gmra.mxu0 %v36
    %v202 = vpop.f32.mrf.mxu0
    %v203 = vadd.f32 %v72, %v202
    %204 = vdwg.mxu0
    %v205 = vmul.f32 %v93, 0.5
    %v206 = vmul.f32 %v158, 0.5
    %v207 = vmul.f32 %v96, 0.5
    %v208 = vmul.f32 %v161, 0.5
    %v209 = vmul.f32 %v99, 0.5
    %v210 = vmul.f32 %v164, 0.5
    %v211 = vmul.f32 %v102, 0.5
    %v212 = vmul.f32 %v167, 0.5
    %v213 = vmul.f32 %v105, 0.5
    %v214 = vmul.f32 %v170, 0.5
    %v215 = vmul.f32 %v108, 0.5
    %v216 = vmul.f32 %v173, 0.5
    %v217 = vmul.f32 %v111, 0.5
    %v218 = vmul.f32 %v176, 0.5
    %v219 = vmul.f32 %v114, 0.5
    %v220 = vmul.f32 %v179, 0.5
    %v221 = vmul.f32 %v117, 0.5
    %v222 = vmul.f32 %v182, 0.5
    %v223 = vmul.f32 %v120, 0.5
    %v224 = vmul.f32 %v185, 0.5
    %v225 = vmul.f32 %v123, 0.5
    %v226 = vmul.f32 %v188, 0.5
    %v227 = vmul.f32 %v126, 0.5
    %v228 = vmul.f32 %v191, 0.5
    %v229 = vmul.f32 %v129, 0.5
    %v230 = vmul.f32 %v194, 0.5
    %v231 = vmul.f32 %v132, 0.5
    %v232 = vmul.f32 %v197, 0.5
    %v233 = vmul.f32 %v135, 0.5
    %v234 = vmul.f32 %v200, 0.5
    %v235 = vmul.f32 %v138, 0.5
    %v236 = vmul.f32 %v203, 0.5
    %v237 = vmul.f32 %v93, 0.70710677
    %v238 = vmul.f32 %v158, 0.70710677
    %v239 = vmul.f32 %v96, 0.70710677
    %v240 = vmul.f32 %v161, 0.70710677
    %v241 = vmul.f32 %v99, 0.70710677
    %v242 = vmul.f32 %v164, 0.70710677
    %v243 = vmul.f32 %v102, 0.70710677
    %v244 = vmul.f32 %v167, 0.70710677
    %v245 = vmul.f32 %v105, 0.70710677
    %v246 = vmul.f32 %v170, 0.70710677
    %v247 = vmul.f32 %v108, 0.70710677
    %v248 = vmul.f32 %v173, 0.70710677
    %v249 = vmul.f32 %v111, 0.70710677
    %v250 = vmul.f32 %v176, 0.70710677
    %v251 = vmul.f32 %v114, 0.70710677
    %v252 = vmul.f32 %v179, 0.70710677
    %v253 = vmul.f32 %v117, 0.70710677
    %v254 = vmul.f32 %v182, 0.70710677
    %v255 = vmul.f32 %v120, 0.70710677
    %v256 = vmul.f32 %v185, 0.70710677
    %v257 = vmul.f32 %v123, 0.70710677
    %v258 = vmul.f32 %v188, 0.70710677
    %v259 = vmul.f32 %v126, 0.70710677
    %v260 = vmul.f32 %v191, 0.70710677
    %v261 = vmul.f32 %v129, 0.70710677
    %v262 = vmul.f32 %v194, 0.70710677
    %v263 = vmul.f32 %v132, 0.70710677
    %v264 = vmul.f32 %v197, 0.70710677
    %v265 = vmul.f32 %v135, 0.70710677
    %v266 = vmul.f32 %v200, 0.70710677
    %v267 = vmul.f32 %v138, 0.70710677
    %v268 = vmul.f32 %v203, 0.70710677
    %v269 = vmul.f32 %v237, %v237
    %v270 = vmin.f32 16.0, %v269
    %v271 = vmul.f32 %v270, 2.1237322e-06
    %v272 = vadd.f32 %v271, 0.00028619796
    %v273 = vmul.f32 %v270, %v272
    %v274 = vadd.f32 %v273, 0.0036580483
    %v275 = vmul.f32 %v270, %v274
    %v276 = vadd.f32 %v275, 0.05243302
    %v277 = vmul.f32 %v270, %v276
    %v278 = vadd.f32 %v277, 0.18741608
    %v279 = vmul.f32 %v270, %v278
    %v280 = vadd.f32 %v279, 1.1283791
    %v281 = vmul.f32 %v237, %v280
    %v282 = vmul.f32 %v270, 3.8918573e-05
    %v283 = vadd.f32 %v282, 0.001143296
    %v284 = vmul.f32 %v270, %v283
    %v285 = vadd.f32 %v284, 0.014752088
    %v286 = vmul.f32 %v270, %v285
    %v287 = vadd.f32 %v286, 0.112945676
    %v288 = vmul.f32 %v270, %v287
    %v289 = vadd.f32 %v288, 0.4994258
    %v290 = vmul.f32 %v270, %v289
    %v291 = vadd.f32 %v290, 1.0
    %v292 = vrcp.pop %v291
    %v293 = vmul.f32 %v291, %v292
    %v294 = vsub.f32 1.0, %v293
    %v295 = vmul.f32 %v292, %v294
    %v296 = vadd.f32 %v292, %v295
    %vm297 = vweird.f32 %v291
    %vm298 = vweird.f32 %v292
    %vm299 = vmor %vm297, %vm298
    %v300 = vsel %vm299, %v292, %v296
    %v301 = vand.u32 2147483647, %v291
    %vm302 = vcmp.eq.f32.partialorder %v301, 8.507059e+37
    %v303 = vand.u32 %v291, 2147483648
    %v304 = vor.u32 1.1754944e-38, %v303
    %v305 = vsel %vm302, %v304, %v300
    %v306 = vmul.f32 %v281, %v305
    %v307 = vmin.f32 %v306, 1.0
    %v308 = vmax.f32 %v307, -1.0
    %v309 = vmul.f32 %v238, %v238
    %v310 = vmin.f32 16.0, %v309
    %v311 = vmul.f32 %v310, 2.1237322e-06
    %v312 = vadd.f32 %v311, 0.00028619796
    %v313 = vmul.f32 %v310, %v312
    %v314 = vadd.f32 %v313, 0.0036580483
    %v315 = vmul.f32 %v310, %v314
    %v316 = vadd.f32 %v315, 0.05243302
    %v317 = vmul.f32 %v310, %v316
    %v318 = vadd.f32 %v317, 0.18741608
    %v319 = vmul.f32 %v310, %v318
    %v320 = vadd.f32 %v319, 1.1283791
    %v321 = vmul.f32 %v238, %v320
    %v322 = vmul.f32 %v310, 3.8918573e-05
    %v323 = vadd.f32 %v322, 0.001143296
    %v324 = vmul.f32 %v310, %v323
    %v325 = vadd.f32 %v324, 0.014752088
    %v326 = vmul.f32 %v310, %v325
    %v327 = vadd.f32 %v326, 0.112945676
    %v328 = vmul.f32 %v310, %v327
    %v329 = vadd.f32 %v328, 0.4994258
    %v330 = vmul.f32 %v310, %v329
    %v331 = vadd.f32 %v330, 1.0
    %v332 = vrcp.pop %v331
    %v333 = vmul.f32 %v331, %v332
    %v334 = vsub.f32 1.0, %v333
    %v335 = vmul.f32 %v332, %v334
    %v336 = vadd.f32 %v332, %v335
    %vm337 = vweird.f32 %v331
    %vm338 = vweird.f32 %v332
    %vm339 = vmor %vm337, %vm338
    %v340 = vsel %vm339, %v332, %v336
    %v341 = vand.u32 2147483647, %v331
    %vm342 = vcmp.eq.f32.partialorder %v341, 8.507059e+37
    %v343 = vand.u32 %v331, 2147483648
    %v344 = vor.u32 1.1754944e-38, %v343
    %v345 = vsel %vm342, %v344, %v340
    %v346 = vmul.f32 %v321, %v345
    %v347 = vmin.f32 %v346, 1.0
    %v348 = vmax.f32 %v347, -1.0
    %v349 = vmul.f32 %v239, %v239
    %v350 = vmin.f32 16.0, %v349
    %v351 = vmul.f32 %v350, 2.1237322e-06
    %v352 = vadd.f32 %v351, 0.00028619796
    %v353 = vmul.f32 %v350, %v352
    %v354 = vadd.f32 %v353, 0.0036580483
    %v355 = vmul.f32 %v350, %v354
    %v356 = vadd.f32 %v355, 0.05243302
    %v357 = vmul.f32 %v350, %v356
    %v358 = vadd.f32 %v357, 0.18741608
    %v359 = vmul.f32 %v350, %v358
    %v360 = vadd.f32 %v359, 1.1283791
    %v361 = vmul.f32 %v239, %v360
    %v362 = vmul.f32 %v350, 3.8918573e-05
    %v363 = vadd.f32 %v362, 0.001143296
    %v364 = vmul.f32 %v350, %v363
    %v365 = vadd.f32 %v364, 0.014752088
    %v366 = vmul.f32 %v350, %v365
    %v367 = vadd.f32 %v366, 0.112945676
    %v368 = vmul.f32 %v350, %v367
    %v369 = vadd.f32 %v368, 0.4994258
    %v370 = vmul.f32 %v350, %v369
    %v371 = vadd.f32 %v370, 1.0
    %v372 = vrcp.pop %v371
    %v373 = vmul.f32 %v371, %v372
    %v374 = vsub.f32 1.0, %v373
    %v375 = vmul.f32 %v372, %v374
    %v376 = vadd.f32 %v372, %v375
    %vm377 = vweird.f32 %v371
    %vm378 = vweird.f32 %v372
    %vm379 = vmor %vm377, %vm378
    %v380 = vsel %vm379, %v372, %v376
    %v381 = vand.u32 2147483647, %v371
    %vm382 = vcmp.eq.f32.partialorder %v381, 8.507059e+37
    %v383 = vand.u32 %v371, 2147483648
    %v384 = vor.u32 1.1754944e-38, %v383
    %v385 = vsel %vm382, %v384, %v380
    %v386 = vmul.f32 %v361, %v385
    %v387 = vmin.f32 %v386, 1.0
    %v388 = vmax.f32 %v387, -1.0
    %v389 = vmul.f32 %v240, %v240
    %v390 = vmin.f32 16.0, %v389
    %v391 = vmul.f32 %v390, 2.1237322e-06
    %v392 = vadd.f32 %v391, 0.00028619796
    %v393 = vmul.f32 %v390, %v392
    %v394 = vadd.f32 %v393, 0.0036580483
    %v395 = vmul.f32 %v390, %v394
    %v396 = vadd.f32 %v395, 0.05243302
    %v397 = vmul.f32 %v390, %v396
    %v398 = vadd.f32 %v397, 0.18741608
    %v399 = vmul.f32 %v390, %v398
    %v400 = vadd.f32 %v399, 1.1283791
    %v401 = vmul.f32 %v240, %v400
    %v402 = vmul.f32 %v390, 3.8918573e-05
    %v403 = vadd.f32 %v402, 0.001143296
    %v404 = vmul.f32 %v390, %v403
    %v405 = vadd.f32 %v404, 0.014752088
    %v406 = vmul.f32 %v390, %v405
    %v407 = vadd.f32 %v406, 0.112945676
    %v408 = vmul.f32 %v390, %v407
    %v409 = vadd.f32 %v408, 0.4994258
    %v410 = vmul.f32 %v390, %v409
    %v411 = vadd.f32 %v410, 1.0
    %v412 = vrcp.pop %v411
    %v413 = vmul.f32 %v411, %v412
    %v414 = vsub.f32 1.0, %v413
    %v415 = vmul.f32 %v412, %v414
    %v416 = vadd.f32 %v412, %v415
    %vm417 = vweird.f32 %v411
    %vm418 = vweird.f32 %v412
    %vm419 = vmor %vm417, %vm418
    %v420 = vsel %vm419, %v412, %v416
    %v421 = vand.u32 2147483647, %v411
    %vm422 = vcmp.eq.f32.partialorder %v421, 8.507059e+37
    %v423 = vand.u32 %v411, 2147483648
    %v424 = vor.u32 1.1754944e-38, %v423
    %v425 = vsel %vm422, %v424, %v420
    %v426 = vmul.f32 %v401, %v425
    %v427 = vmin.f32 %v426, 1.0
    %v428 = vmax.f32 %v427, -1.0
    %v429 = vmul.f32 %v241, %v241
    %v430 = vmin.f32 16.0, %v429
    %v431 = vmul.f32 %v430, 2.1237322e-06
    %v432 = vadd.f32 %v431, 0.00028619796
    %v433 = vmul.f32 %v430, %v432
    %v434 = vadd.f32 %v433, 0.0036580483
    %v435 = vmul.f32 %v430, %v434
    %v436 = vadd.f32 %v435, 0.05243302
    %v437 = vmul.f32 %v430, %v436
    %v438 = vadd.f32 %v437, 0.18741608
    %v439 = vmul.f32 %v430, %v438
    %v440 = vadd.f32 %v439, 1.1283791
    %v441 = vmul.f32 %v241, %v440
    %v442 = vmul.f32 %v430, 3.8918573e-05
    %v443 = vadd.f32 %v442, 0.001143296
    %v444 = vmul.f32 %v430, %v443
    %v445 = vadd.f32 %v444, 0.014752088
    %v446 = vmul.f32 %v430, %v445
    %v447 = vadd.f32 %v446, 0.112945676
    %v448 = vmul.f32 %v430, %v447
    %v449 = vadd.f32 %v448, 0.4994258
    %v450 = vmul.f32 %v430, %v449
    %v451 = vadd.f32 %v450, 1.0
    %v452 = vrcp.pop %v451
    %v453 = vmul.f32 %v451, %v452
    %v454 = vsub.f32 1.0, %v453
    %v455 = vmul.f32 %v452, %v454
    %v456 = vadd.f32 %v452, %v455
    %vm457 = vweird.f32 %v451
    %vm458 = vweird.f32 %v452
    %vm459 = vmor %vm457, %vm458
    %v460 = vsel %vm459, %v452, %v456
    %v461 = vand.u32 2147483647, %v451
    %vm462 = vcmp.eq.f32.partialorder %v461, 8.507059e+37
    %v463 = vand.u32 %v451, 2147483648
    %v464 = vor.u32 1.1754944e-38, %v463
    %v465 = vsel %vm462, %v464, %v460
    %v466 = vmul.f32 %v441, %v465
    %v467 = vmin.f32 %v466, 1.0
    %v468 = vmax.f32 %v467, -1.0
    %v469 = vmul.f32 %v242, %v242
    %v470 = vmin.f32 16.0, %v469
    %v471 = vmul.f32 %v470, 2.1237322e-06
    %v472 = vadd.f32 %v471, 0.00028619796
    %v473 = vmul.f32 %v470, %v472
    %v474 = vadd.f32 %v473, 0.0036580483
    %v475 = vmul.f32 %v470, %v474
    %v476 = vadd.f32 %v475, 0.05243302
    %v477 = vmul.f32 %v470, %v476
    %v478 = vadd.f32 %v477, 0.18741608
    %v479 = vmul.f32 %v470, %v478
    %v480 = vadd.f32 %v479, 1.1283791
    %v481 = vmul.f32 %v242, %v480
    %v482 = vmul.f32 %v470, 3.8918573e-05
    %v483 = vadd.f32 %v482, 0.001143296
    %v484 = vmul.f32 %v470, %v483
    %v485 = vadd.f32 %v484, 0.014752088
    %v486 = vmul.f32 %v470, %v485
    %v487 = vadd.f32 %v486, 0.112945676
    %v488 = vmul.f32 %v470, %v487
    %v489 = vadd.f32 %v488, 0.4994258
    %v490 = vmul.f32 %v470, %v489
    %v491 = vadd.f32 %v490, 1.0
    %v492 = vrcp.pop %v491
    %v493 = vmul.f32 %v491, %v492
    %v494 = vsub.f32 1.0, %v493
    %v495 = vmul.f32 %v492, %v494
    %v496 = vadd.f32 %v492, %v495
    %vm497 = vweird.f32 %v491
    %vm498 = vweird.f32 %v492
    %vm499 = vmor %vm497, %vm498
    %v500 = vsel %vm499, %v492, %v496
    %v501 = vand.u32 2147483647, %v491
    %vm502 = vcmp.eq.f32.partialorder %v501, 8.507059e+37
    %v503 = vand.u32 %v491, 2147483648
    %v504 = vor.u32 1.1754944e-38, %v503
    %v505 = vsel %vm502, %v504, %v500
    %v506 = vmul.f32 %v481, %v505
    %v507 = vmin.f32 %v506, 1.0
    %v508 = vmax.f32 %v507, -1.0
    %v509 = vmul.f32 %v243, %v243
    %v510 = vmin.f32 16.0, %v509
    %v511 = vmul.f32 %v510, 2.1237322e-06
    %v512 = vadd.f32 %v511, 0.00028619796
    %v513 = vmul.f32 %v510, %v512
    %v514 = vadd.f32 %v513, 0.0036580483
    %v515 = vmul.f32 %v510, %v514
    %v516 = vadd.f32 %v515, 0.05243302
    %v517 = vmul.f32 %v510, %v516
    %v518 = vadd.f32 %v517, 0.18741608
    %v519 = vmul.f32 %v510, %v518
    %v520 = vadd.f32 %v519, 1.1283791
    %v521 = vmul.f32 %v243, %v520
    %v522 = vmul.f32 %v510, 3.8918573e-05
    %v523 = vadd.f32 %v522, 0.001143296
    %v524 = vmul.f32 %v510, %v523
    %v525 = vadd.f32 %v524, 0.014752088
    %v526 = vmul.f32 %v510, %v525
    %v527 = vadd.f32 %v526, 0.112945676
    %v528 = vmul.f32 %v510, %v527
    %v529 = vadd.f32 %v528, 0.4994258
    %v530 = vmul.f32 %v510, %v529
    %v531 = vadd.f32 %v530, 1.0
    %v532 = vrcp.pop %v531
    %v533 = vmul.f32 %v531, %v532
    %v534 = vsub.f32 1.0, %v533
    %v535 = vmul.f32 %v532, %v534
    %v536 = vadd.f32 %v532, %v535
    %vm537 = vweird.f32 %v531
    %vm538 = vweird.f32 %v532
    %vm539 = vmor %vm537, %vm538
    %v540 = vsel %vm539, %v532, %v536
    %v541 = vand.u32 2147483647, %v531
    %vm542 = vcmp.eq.f32.partialorder %v541, 8.507059e+37
    %v543 = vand.u32 %v531, 2147483648
    %v544 = vor.u32 1.1754944e-38, %v543
    %v545 = vsel %vm542, %v544, %v540
    %v546 = vmul.f32 %v521, %v545
    %v547 = vmin.f32 %v546, 1.0
    %v548 = vmax.f32 %v547, -1.0
    %v549 = vmul.f32 %v244, %v244
    %v550 = vmin.f32 16.0, %v549
    %v551 = vmul.f32 %v550, 2.1237322e-06
    %v552 = vadd.f32 %v551, 0.00028619796
    %v553 = vmul.f32 %v550, %v552
    %v554 = vadd.f32 %v553, 0.0036580483
    %v555 = vmul.f32 %v550, %v554
    %v556 = vadd.f32 %v555, 0.05243302
    %v557 = vmul.f32 %v550, %v556
    %v558 = vadd.f32 %v557, 0.18741608
    %v559 = vmul.f32 %v550, %v558
    %v560 = vadd.f32 %v559, 1.1283791
    %v561 = vmul.f32 %v244, %v560
    %v562 = vmul.f32 %v550, 3.8918573e-05
    %v563 = vadd.f32 %v562, 0.001143296
    %v564 = vmul.f32 %v550, %v563
    %v565 = vadd.f32 %v564, 0.014752088
    %v566 = vmul.f32 %v550, %v565
    %v567 = vadd.f32 %v566, 0.112945676
    %v568 = vmul.f32 %v550, %v567
    %v569 = vadd.f32 %v568, 0.4994258
    %v570 = vmul.f32 %v550, %v569
    %v571 = vadd.f32 %v570, 1.0
    %v572 = vrcp.pop %v571
    %v573 = vmul.f32 %v571, %v572
    %v574 = vsub.f32 1.0, %v573
    %v575 = vmul.f32 %v572, %v574
    %v576 = vadd.f32 %v572, %v575
    %vm577 = vweird.f32 %v571
    %vm578 = vweird.f32 %v572
    %vm579 = vmor %vm577, %vm578
    %v580 = vsel %vm579, %v572, %v576
    %v581 = vand.u32 2147483647, %v571
    %vm582 = vcmp.eq.f32.partialorder %v581, 8.507059e+37
    %v583 = vand.u32 %v571, 2147483648
    %v584 = vor.u32 1.1754944e-38, %v583
    %v585 = vsel %vm582, %v584, %v580
    %v586 = vmul.f32 %v561, %v585
    %v587 = vmin.f32 %v586, 1.0
    %v588 = vmax.f32 %v587, -1.0
    %v589 = vmul.f32 %v245, %v245
    %v590 = vmin.f32 16.0, %v589
    %v591 = vmul.f32 %v590, 2.1237322e-06
    %v592 = vadd.f32 %v591, 0.00028619796
    %v593 = vmul.f32 %v590, %v592
    %v594 = vadd.f32 %v593, 0.0036580483
    %v595 = vmul.f32 %v590, %v594
    %v596 = vadd.f32 %v595, 0.05243302
    %v597 = vmul.f32 %v590, %v596
    %v598 = vadd.f32 %v597, 0.18741608
    %v599 = vmul.f32 %v590, %v598
    %v600 = vadd.f32 %v599, 1.1283791
    %v601 = vmul.f32 %v245, %v600
    %v602 = vmul.f32 %v590, 3.8918573e-05
    %v603 = vadd.f32 %v602, 0.001143296
    %v604 = vmul.f32 %v590, %v603
    %v605 = vadd.f32 %v604, 0.014752088
    %v606 = vmul.f32 %v590, %v605
    %v607 = vadd.f32 %v606, 0.112945676
    %v608 = vmul.f32 %v590, %v607
    %v609 = vadd.f32 %v608, 0.4994258
    %v610 = vmul.f32 %v590, %v609
    %v611 = vadd.f32 %v610, 1.0
    %v612 = vrcp.pop %v611
    %v613 = vmul.f32 %v611, %v612
    %v614 = vsub.f32 1.0, %v613
    %v615 = vmul.f32 %v612, %v614
    %v616 = vadd.f32 %v612, %v615
    %vm617 = vweird.f32 %v611
    %vm618 = vweird.f32 %v612
    %vm619 = vmor %vm617, %vm618
    %v620 = vsel %vm619, %v612, %v616
    %v621 = vand.u32 2147483647, %v611
    %vm622 = vcmp.eq.f32.partialorder %v621, 8.507059e+37
    %v623 = vand.u32 %v611, 2147483648
    %v624 = vor.u32 1.1754944e-38, %v623
    %v625 = vsel %vm622, %v624, %v620
    %v626 = vmul.f32 %v601, %v625
    %v627 = vmin.f32 %v626, 1.0
    %v628 = vmax.f32 %v627, -1.0
    %v629 = vmul.f32 %v246, %v246
    %v630 = vmin.f32 16.0, %v629
    %v631 = vmul.f32 %v630, 2.1237322e-06
    %v632 = vadd.f32 %v631, 0.00028619796
    %v633 = vmul.f32 %v630, %v632
    %v634 = vadd.f32 %v633, 0.0036580483
    %v635 = vmul.f32 %v630, %v634
    %v636 = vadd.f32 %v635, 0.05243302
    %v637 = vmul.f32 %v630, %v636
    %v638 = vadd.f32 %v637, 0.18741608
    %v639 = vmul.f32 %v630, %v638
    %v640 = vadd.f32 %v639, 1.1283791
    %v641 = vmul.f32 %v246, %v640
    %v642 = vmul.f32 %v630, 3.8918573e-05
    %v643 = vadd.f32 %v642, 0.001143296
    %v644 = vmul.f32 %v630, %v643
    %v645 = vadd.f32 %v644, 0.014752088
    %v646 = vmul.f32 %v630, %v645
    %v647 = vadd.f32 %v646, 0.112945676
    %v648 = vmul.f32 %v630, %v647
    %v649 = vadd.f32 %v648, 0.4994258
    %v650 = vmul.f32 %v630, %v649
    %v651 = vadd.f32 %v650, 1.0
    %v652 = vrcp.pop %v651
    %v653 = vmul.f32 %v651, %v652
    %v654 = vsub.f32 1.0, %v653
    %v655 = vmul.f32 %v652, %v654
    %v656 = vadd.f32 %v652, %v655
    %vm657 = vweird.f32 %v651
    %vm658 = vweird.f32 %v652
    %vm659 = vmor %vm657, %vm658
    %v660 = vsel %vm659, %v652, %v656
    %v661 = vand.u32 2147483647, %v651
    %vm662 = vcmp.eq.f32.partialorder %v661, 8.507059e+37
    %v663 = vand.u32 %v651, 2147483648
    %v664 = vor.u32 1.1754944e-38, %v663
    %v665 = vsel %vm662, %v664, %v660
    %v666 = vmul.f32 %v641, %v665
    %v667 = vmin.f32 %v666, 1.0
    %v668 = vmax.f32 %v667, -1.0
    %v669 = vmul.f32 %v247, %v247
    %v670 = vmin.f32 16.0, %v669
    %v671 = vmul.f32 %v670, 2.1237322e-06
    %v672 = vadd.f32 %v671, 0.00028619796
    %v673 = vmul.f32 %v670, %v672
    %v674 = vadd.f32 %v673, 0.0036580483
    %v675 = vmul.f32 %v670, %v674
    %v676 = vadd.f32 %v675, 0.05243302
    %v677 = vmul.f32 %v670, %v676
    %v678 = vadd.f32 %v677, 0.18741608
    %v679 = vmul.f32 %v670, %v678
    %v680 = vadd.f32 %v679, 1.1283791
    %v681 = vmul.f32 %v247, %v680
    %v682 = vmul.f32 %v670, 3.8918573e-05
    %v683 = vadd.f32 %v682, 0.001143296
    %v684 = vmul.f32 %v670, %v683
    %v685 = vadd.f32 %v684, 0.014752088
    %v686 = vmul.f32 %v670, %v685
    %v687 = vadd.f32 %v686, 0.112945676
    %v688 = vmul.f32 %v670, %v687
    %v689 = vadd.f32 %v688, 0.4994258
    %v690 = vmul.f32 %v670, %v689
    %v691 = vadd.f32 %v690, 1.0
    %v692 = vrcp.pop %v691
    %v693 = vmul.f32 %v691, %v692
    %v694 = vsub.f32 1.0, %v693
    %v695 = vmul.f32 %v692, %v694
    %v696 = vadd.f32 %v692, %v695
    %vm697 = vweird.f32 %v691
    %vm698 = vweird.f32 %v692
    %vm699 = vmor %vm697, %vm698
    %v700 = vsel %vm699, %v692, %v696
    %v701 = vand.u32 2147483647, %v691
    %vm702 = vcmp.eq.f32.partialorder %v701, 8.507059e+37
    %v703 = vand.u32 %v691, 2147483648
    %v704 = vor.u32 1.1754944e-38, %v703
    %v705 = vsel %vm702, %v704, %v700
    %v706 = vmul.f32 %v681, %v705
    %v707 = vmin.f32 %v706, 1.0
    %v708 = vmax.f32 %v707, -1.0
    %v709 = vmul.f32 %v248, %v248
    %v710 = vmin.f32 16.0, %v709
    %v711 = vmul.f32 %v710, 2.1237322e-06
    %v712 = vadd.f32 %v711, 0.00028619796
    %v713 = vmul.f32 %v710, %v712
    %v714 = vadd.f32 %v713, 0.0036580483
    %v715 = vmul.f32 %v710, %v714
    %v716 = vadd.f32 %v715, 0.05243302
    %v717 = vmul.f32 %v710, %v716
    %v718 = vadd.f32 %v717, 0.18741608
    %v719 = vmul.f32 %v710, %v718
    %v720 = vadd.f32 %v719, 1.1283791
    %v721 = vmul.f32 %v248, %v720
    %v722 = vmul.f32 %v710, 3.8918573e-05
    %v723 = vadd.f32 %v722, 0.001143296
    %v724 = vmul.f32 %v710, %v723
    %v725 = vadd.f32 %v724, 0.014752088
    %v726 = vmul.f32 %v710, %v725
    %v727 = vadd.f32 %v726, 0.112945676
    %v728 = vmul.f32 %v710, %v727
    %v729 = vadd.f32 %v728, 0.4994258
    %v730 = vmul.f32 %v710, %v729
    %v731 = vadd.f32 %v730, 1.0
    %v732 = vrcp.pop %v731
    %v733 = vmul.f32 %v731, %v732
    %v734 = vsub.f32 1.0, %v733
    %v735 = vmul.f32 %v732, %v734
    %v736 = vadd.f32 %v732, %v735
    %vm737 = vweird.f32 %v731
    %vm738 = vweird.f32 %v732
    %vm739 = vmor %vm737, %vm738
    %v740 = vsel %vm739, %v732, %v736
    %v741 = vand.u32 2147483647, %v731
    %vm742 = vcmp.eq.f32.partialorder %v741, 8.507059e+37
    %v743 = vand.u32 %v731, 2147483648
    %v744 = vor.u32 1.1754944e-38, %v743
    %v745 = vsel %vm742, %v744, %v740
    %v746 = vmul.f32 %v721, %v745
    %v747 = vmin.f32 %v746, 1.0
    %v748 = vmax.f32 %v747, -1.0
    %v749 = vmul.f32 %v249, %v249
    %v750 = vmin.f32 16.0, %v749
    %v751 = vmul.f32 %v750, 2.1237322e-06
    %v752 = vadd.f32 %v751, 0.00028619796
    %v753 = vmul.f32 %v750, %v752
    %v754 = vadd.f32 %v753, 0.0036580483
    %v755 = vmul.f32 %v750, %v754
    %v756 = vadd.f32 %v755, 0.05243302
    %v757 = vmul.f32 %v750, %v756
    %v758 = vadd.f32 %v757, 0.18741608
    %v759 = vmul.f32 %v750, %v758
    %v760 = vadd.f32 %v759, 1.1283791
    %v761 = vmul.f32 %v249, %v760
    %v762 = vmul.f32 %v750, 3.8918573e-05
    %v763 = vadd.f32 %v762, 0.001143296
    %v764 = vmul.f32 %v750, %v763
    %v765 = vadd.f32 %v764, 0.014752088
    %v766 = vmul.f32 %v750, %v765
    %v767 = vadd.f32 %v766, 0.112945676
    %v768 = vmul.f32 %v750, %v767
    %v769 = vadd.f32 %v768, 0.4994258
    %v770 = vmul.f32 %v750, %v769
    %v771 = vadd.f32 %v770, 1.0
    %v772 = vrcp.pop %v771
    %v773 = vmul.f32 %v771, %v772
    %v774 = vsub.f32 1.0, %v773
    %v775 = vmul.f32 %v772, %v774
    %v776 = vadd.f32 %v772, %v775
    %vm777 = vweird.f32 %v771
    %vm778 = vweird.f32 %v772
    %vm779 = vmor %vm777, %vm778
    %v780 = vsel %vm779, %v772, %v776
    %v781 = vand.u32 2147483647, %v771
    %vm782 = vcmp.eq.f32.partialorder %v781, 8.507059e+37
    %v783 = vand.u32 %v771, 2147483648
    %v784 = vor.u32 1.1754944e-38, %v783
    %v785 = vsel %vm782, %v784, %v780
    %v786 = vmul.f32 %v761, %v785
    %v787 = vmin.f32 %v786, 1.0
    %v788 = vmax.f32 %v787, -1.0
    %v789 = vmul.f32 %v250, %v250
    %v790 = vmin.f32 16.0, %v789
    %v791 = vmul.f32 %v790, 2.1237322e-06
    %v792 = vadd.f32 %v791, 0.00028619796
    %v793 = vmul.f32 %v790, %v792
    %v794 = vadd.f32 %v793, 0.0036580483
    %v795 = vmul.f32 %v790, %v794
    %v796 = vadd.f32 %v795, 0.05243302
    %v797 = vmul.f32 %v790, %v796
    %v798 = vadd.f32 %v797, 0.18741608
    %v799 = vmul.f32 %v790, %v798
    %v800 = vadd.f32 %v799, 1.1283791
    %v801 = vmul.f32 %v250, %v800
    %v802 = vmul.f32 %v790, 3.8918573e-05
    %v803 = vadd.f32 %v802, 0.001143296
    %v804 = vmul.f32 %v790, %v803
    %v805 = vadd.f32 %v804, 0.014752088
    %v806 = vmul.f32 %v790, %v805
    %v807 = vadd.f32 %v806, 0.112945676
    %v808 = vmul.f32 %v790, %v807
    %v809 = vadd.f32 %v808, 0.4994258
    %v810 = vmul.f32 %v790, %v809
    %v811 = vadd.f32 %v810, 1.0
    %v812 = vrcp.pop %v811
    %v813 = vmul.f32 %v811, %v812
    %v814 = vsub.f32 1.0, %v813
    %v815 = vmul.f32 %v812, %v814
    %v816 = vadd.f32 %v812, %v815
    %vm817 = vweird.f32 %v811
    %vm818 = vweird.f32 %v812
    %vm819 = vmor %vm817, %vm818
    %v820 = vsel %vm819, %v812, %v816
    %v821 = vand.u32 2147483647, %v811
    %vm822 = vcmp.eq.f32.partialorder %v821, 8.507059e+37
    %v823 = vand.u32 %v811, 2147483648
    %v824 = vor.u32 1.1754944e-38, %v823
    %v825 = vsel %vm822, %v824, %v820
    %v826 = vmul.f32 %v801, %v825
    %v827 = vmin.f32 %v826, 1.0
    %v828 = vmax.f32 %v827, -1.0
    %v829 = vmul.f32 %v251, %v251
    %v830 = vmin.f32 16.0, %v829
    %v831 = vmul.f32 %v830, 2.1237322e-06
    %v832 = vadd.f32 %v831, 0.00028619796
    %v833 = vmul.f32 %v830, %v832
    %v834 = vadd.f32 %v833, 0.0036580483
    %v835 = vmul.f32 %v830, %v834
    %v836 = vadd.f32 %v835, 0.05243302
    %v837 = vmul.f32 %v830, %v836
    %v838 = vadd.f32 %v837, 0.18741608
    %v839 = vmul.f32 %v830, %v838
    %v840 = vadd.f32 %v839, 1.1283791
    %v841 = vmul.f32 %v251, %v840
    %v842 = vmul.f32 %v830, 3.8918573e-05
    %v843 = vadd.f32 %v842, 0.001143296
    %v844 = vmul.f32 %v830, %v843
    %v845 = vadd.f32 %v844, 0.014752088
    %v846 = vmul.f32 %v830, %v845
    %v847 = vadd.f32 %v846, 0.112945676
    %v848 = vmul.f32 %v830, %v847
    %v849 = vadd.f32 %v848, 0.4994258
    %v850 = vmul.f32 %v830, %v849
    %v851 = vadd.f32 %v850, 1.0
    %v852 = vrcp.pop %v851
    %v853 = vmul.f32 %v851, %v852
    %v854 = vsub.f32 1.0, %v853
    %v855 = vmul.f32 %v852, %v854
    %v856 = vadd.f32 %v852, %v855
    %vm857 = vweird.f32 %v851
    %vm858 = vweird.f32 %v852
    %vm859 = vmor %vm857, %vm858
    %v860 = vsel %vm859, %v852, %v856
    %v861 = vand.u32 2147483647, %v851
    %vm862 = vcmp.eq.f32.partialorder %v861, 8.507059e+37
    %v863 = vand.u32 %v851, 2147483648
    %v864 = vor.u32 1.1754944e-38, %v863
    %v865 = vsel %vm862, %v864, %v860
    %v866 = vmul.f32 %v841, %v865
    %v867 = vmin.f32 %v866, 1.0
    %v868 = vmax.f32 %v867, -1.0
    %v869 = vmul.f32 %v252, %v252
    %v870 = vmin.f32 16.0, %v869
    %v871 = vmul.f32 %v870, 2.1237322e-06
    %v872 = vadd.f32 %v871, 0.00028619796
    %v873 = vmul.f32 %v870, %v872
    %v874 = vadd.f32 %v873, 0.0036580483
    %v875 = vmul.f32 %v870, %v874
    %v876 = vadd.f32 %v875, 0.05243302
    %v877 = vmul.f32 %v870, %v876
    %v878 = vadd.f32 %v877, 0.18741608
    %v879 = vmul.f32 %v870, %v878
    %v880 = vadd.f32 %v879, 1.1283791
    %v881 = vmul.f32 %v252, %v880
    %v882 = vmul.f32 %v870, 3.8918573e-05
    %v883 = vadd.f32 %v882, 0.001143296
    %v884 = vmul.f32 %v870, %v883
    %v885 = vadd.f32 %v884, 0.014752088
    %v886 = vmul.f32 %v870, %v885
    %v887 = vadd.f32 %v886, 0.112945676
    %v888 = vmul.f32 %v870, %v887
    %v889 = vadd.f32 %v888, 0.4994258
    %v890 = vmul.f32 %v870, %v889
    %v891 = vadd.f32 %v890, 1.0
    %v892 = vrcp.pop %v891
    %v893 = vmul.f32 %v891, %v892
    %v894 = vsub.f32 1.0, %v893
    %v895 = vmul.f32 %v892, %v894
    %v896 = vadd.f32 %v892, %v895
    %vm897 = vweird.f32 %v891
    %vm898 = vweird.f32 %v892
    %vm899 = vmor %vm897, %vm898
    %v900 = vsel %vm899, %v892, %v896
    %v901 = vand.u32 2147483647, %v891
    %vm902 = vcmp.eq.f32.partialorder %v901, 8.507059e+37
    %v903 = vand.u32 %v891, 2147483648
    %v904 = vor.u32 1.1754944e-38, %v903
    %v905 = vsel %vm902, %v904, %v900
    %v906 = vmul.f32 %v881, %v905
    %v907 = vmin.f32 %v906, 1.0
    %v908 = vmax.f32 %v907, -1.0
    %v909 = vmul.f32 %v253, %v253
    %v910 = vmin.f32 16.0, %v909
    %v911 = vmul.f32 %v910, 2.1237322e-06
    %v912 = vadd.f32 %v911, 0.00028619796
    %v913 = vmul.f32 %v910, %v912
    %v914 = vadd.f32 %v913, 0.0036580483
    %v915 = vmul.f32 %v910, %v914
    %v916 = vadd.f32 %v915, 0.05243302
    %v917 = vmul.f32 %v910, %v916
    %v918 = vadd.f32 %v917, 0.18741608
    %v919 = vmul.f32 %v910, %v918
    %v920 = vadd.f32 %v919, 1.1283791
    %v921 = vmul.f32 %v253, %v920
    %v922 = vmul.f32 %v910, 3.8918573e-05
    %v923 = vadd.f32 %v922, 0.001143296
    %v924 = vmul.f32 %v910, %v923
    %v925 = vadd.f32 %v924, 0.014752088
    %v926 = vmul.f32 %v910, %v925
    %v927 = vadd.f32 %v926, 0.112945676
    %v928 = vmul.f32 %v910, %v927
    %v929 = vadd.f32 %v928, 0.4994258
    %v930 = vmul.f32 %v910, %v929
    %v931 = vadd.f32 %v930, 1.0
    %v932 = vrcp.pop %v931
    %v933 = vmul.f32 %v931, %v932
    %v934 = vsub.f32 1.0, %v933
    %v935 = vmul.f32 %v932, %v934
    %v936 = vadd.f32 %v932, %v935
    %vm937 = vweird.f32 %v931
    %vm938 = vweird.f32 %v932
    %vm939 = vmor %vm937, %vm938
    %v940 = vsel %vm939, %v932, %v936
    %v941 = vand.u32 2147483647, %v931
    %vm942 = vcmp.eq.f32.partialorder %v941, 8.507059e+37
    %v943 = vand.u32 %v931, 2147483648
    %v944 = vor.u32 1.1754944e-38, %v943
    %v945 = vsel %vm942, %v944, %v940
    %v946 = vmul.f32 %v921, %v945
    %v947 = vmin.f32 %v946, 1.0
    %v948 = vmax.f32 %v947, -1.0
    %v949 = vmul.f32 %v254, %v254
    %v950 = vmin.f32 16.0, %v949
    %v951 = vmul.f32 %v950, 2.1237322e-06
    %v952 = vadd.f32 %v951, 0.00028619796
    %v953 = vmul.f32 %v950, %v952
    %v954 = vadd.f32 %v953, 0.0036580483
    %v955 = vmul.f32 %v950, %v954
    %v956 = vadd.f32 %v955, 0.05243302
    %v957 = vmul.f32 %v950, %v956
    %v958 = vadd.f32 %v957, 0.18741608
    %v959 = vmul.f32 %v950, %v958
    %v960 = vadd.f32 %v959, 1.1283791
    %v961 = vmul.f32 %v254, %v960
    %v962 = vmul.f32 %v950, 3.8918573e-05
    %v963 = vadd.f32 %v962, 0.001143296
    %v964 = vmul.f32 %v950, %v963
    %v965 = vadd.f32 %v964, 0.014752088
    %v966 = vmul.f32 %v950, %v965
    %v967 = vadd.f32 %v966, 0.112945676
    %v968 = vmul.f32 %v950, %v967
    %v969 = vadd.f32 %v968, 0.4994258
    %v970 = vmul.f32 %v950, %v969
    %v971 = vadd.f32 %v970, 1.0
    %v972 = vrcp.pop %v971
    %v973 = vmul.f32 %v971, %v972
    %v974 = vsub.f32 1.0, %v973
    %v975 = vmul.f32 %v972, %v974
    %v976 = vadd.f32 %v972, %v975
    %vm977 = vweird.f32 %v971
    %vm978 = vweird.f32 %v972
    %vm979 = vmor %vm977, %vm978
    %v980 = vsel %vm979, %v972, %v976
    %v981 = vand.u32 2147483647, %v971
    %vm982 = vcmp.eq.f32.partialorder %v981, 8.507059e+37
    %v983 = vand.u32 %v971, 2147483648
    %v984 = vor.u32 1.1754944e-38, %v983
    %v985 = vsel %vm982, %v984, %v980
    %v986 = vmul.f32 %v961, %v985
    %v987 = vmin.f32 %v986, 1.0
    %v988 = vmax.f32 %v987, -1.0
    %v989 = vmul.f32 %v255, %v255
    %v990 = vmin.f32 16.0, %v989
    %v991 = vmul.f32 %v990, 2.1237322e-06
    %v992 = vadd.f32 %v991, 0.00028619796
    %v993 = vmul.f32 %v990, %v992
    %v994 = vadd.f32 %v993, 0.0036580483
    %v995 = vmul.f32 %v990, %v994
    %v996 = vadd.f32 %v995, 0.05243302
    %v997 = vmul.f32 %v990, %v996
    %v998 = vadd.f32 %v997, 0.18741608
    %v999 = vmul.f32 %v990, %v998
    %v1000 = vadd.f32 %v999, 1.1283791
    %v1001 = vmul.f32 %v255, %v1000
    %v1002 = vmul.f32 %v990, 3.8918573e-05
    %v1003 = vadd.f32 %v1002, 0.001143296
    %v1004 = vmul.f32 %v990, %v1003
    %v1005 = vadd.f32 %v1004, 0.014752088
    %v1006 = vmul.f32 %v990, %v1005
    %v1007 = vadd.f32 %v1006, 0.112945676
    %v1008 = vmul.f32 %v990, %v1007
    %v1009 = vadd.f32 %v1008, 0.4994258
    %v1010 = vmul.f32 %v990, %v1009
    %v1011 = vadd.f32 %v1010, 1.0
    %v1012 = vrcp.pop %v1011
    %v1013 = vmul.f32 %v1011, %v1012
    %v1014 = vsub.f32 1.0, %v1013
    %v1015 = vmul.f32 %v1012, %v1014
    %v1016 = vadd.f32 %v1012, %v1015
    %vm1017 = vweird.f32 %v1011
    %vm1018 = vweird.f32 %v1012
    %vm1019 = vmor %vm1017, %vm1018
    %v1020 = vsel %vm1019, %v1012, %v1016
    %v1021 = vand.u32 2147483647, %v1011
    %vm1022 = vcmp.eq.f32.partialorder %v1021, 8.507059e+37
    %v1023 = vand.u32 %v1011, 2147483648
    %v1024 = vor.u32 1.1754944e-38, %v1023
    %v1025 = vsel %vm1022, %v1024, %v1020
    %v1026 = vmul.f32 %v1001, %v1025
    %v1027 = vmin.f32 %v1026, 1.0
    %v1028 = vmax.f32 %v1027, -1.0
    %v1029 = vmul.f32 %v256, %v256
    %v1030 = vmin.f32 16.0, %v1029
    %v1031 = vmul.f32 %v1030, 2.1237322e-06
    %v1032 = vadd.f32 %v1031, 0.00028619796
    %v1033 = vmul.f32 %v1030, %v1032
    %v1034 = vadd.f32 %v1033, 0.0036580483
    %v1035 = vmul.f32 %v1030, %v1034
    %v1036 = vadd.f32 %v1035, 0.05243302
    %v1037 = vmul.f32 %v1030, %v1036
    %v1038 = vadd.f32 %v1037, 0.18741608
    %v1039 = vmul.f32 %v1030, %v1038
    %v1040 = vadd.f32 %v1039, 1.1283791
    %v1041 = vmul.f32 %v256, %v1040
    %v1042 = vmul.f32 %v1030, 3.8918573e-05
    %v1043 = vadd.f32 %v1042, 0.001143296
    %v1044 = vmul.f32 %v1030, %v1043
    %v1045 = vadd.f32 %v1044, 0.014752088
    %v1046 = vmul.f32 %v1030, %v1045
    %v1047 = vadd.f32 %v1046, 0.112945676
    %v1048 = vmul.f32 %v1030, %v1047
    %v1049 = vadd.f32 %v1048, 0.4994258
    %v1050 = vmul.f32 %v1030, %v1049
    %v1051 = vadd.f32 %v1050, 1.0
    %v1052 = vrcp.pop %v1051
    %v1053 = vmul.f32 %v1051, %v1052
    %v1054 = vsub.f32 1.0, %v1053
    %v1055 = vmul.f32 %v1052, %v1054
    %v1056 = vadd.f32 %v1052, %v1055
    %vm1057 = vweird.f32 %v1051
    %vm1058 = vweird.f32 %v1052
    %vm1059 = vmor %vm1057, %vm1058
    %v1060 = vsel %vm1059, %v1052, %v1056
    %v1061 = vand.u32 2147483647, %v1051
    %vm1062 = vcmp.eq.f32.partialorder %v1061, 8.507059e+37
    %v1063 = vand.u32 %v1051, 2147483648
    %v1064 = vor.u32 1.1754944e-38, %v1063
    %v1065 = vsel %vm1062, %v1064, %v1060
    %v1066 = vmul.f32 %v1041, %v1065
    %v1067 = vmin.f32 %v1066, 1.0
    %v1068 = vmax.f32 %v1067, -1.0
    %v1069 = vmul.f32 %v257, %v257
    %v1070 = vmin.f32 16.0, %v1069
    %v1071 = vmul.f32 %v1070, 2.1237322e-06
    %v1072 = vadd.f32 %v1071, 0.00028619796
    %v1073 = vmul.f32 %v1070, %v1072
    %v1074 = vadd.f32 %v1073, 0.0036580483
    %v1075 = vmul.f32 %v1070, %v1074
    %v1076 = vadd.f32 %v1075, 0.05243302
    %v1077 = vmul.f32 %v1070, %v1076
    %v1078 = vadd.f32 %v1077, 0.18741608
    %v1079 = vmul.f32 %v1070, %v1078
    %v1080 = vadd.f32 %v1079, 1.1283791
    %v1081 = vmul.f32 %v257, %v1080
    %v1082 = vmul.f32 %v1070, 3.8918573e-05
    %v1083 = vadd.f32 %v1082, 0.001143296
    %v1084 = vmul.f32 %v1070, %v1083
    %v1085 = vadd.f32 %v1084, 0.014752088
    %v1086 = vmul.f32 %v1070, %v1085
    %v1087 = vadd.f32 %v1086, 0.112945676
    %v1088 = vmul.f32 %v1070, %v1087
    %v1089 = vadd.f32 %v1088, 0.4994258
    %v1090 = vmul.f32 %v1070, %v1089
    %v1091 = vadd.f32 %v1090, 1.0
    %v1092 = vrcp.pop %v1091
    %v1093 = vmul.f32 %v1091, %v1092
    %v1094 = vsub.f32 1.0, %v1093
    %v1095 = vmul.f32 %v1092, %v1094
    %v1096 = vadd.f32 %v1092, %v1095
    %vm1097 = vweird.f32 %v1091
    %vm1098 = vweird.f32 %v1092
    %vm1099 = vmor %vm1097, %vm1098
    %v1100 = vsel %vm1099, %v1092, %v1096
    %v1101 = vand.u32 2147483647, %v1091
    %vm1102 = vcmp.eq.f32.partialorder %v1101, 8.507059e+37
    %v1103 = vand.u32 %v1091, 2147483648
    %v1104 = vor.u32 1.1754944e-38, %v1103
    %v1105 = vsel %vm1102, %v1104, %v1100
    %v1106 = vmul.f32 %v1081, %v1105
    %v1107 = vmin.f32 %v1106, 1.0
    %v1108 = vmax.f32 %v1107, -1.0
    %v1109 = vmul.f32 %v258, %v258
    %v1110 = vmin.f32 16.0, %v1109
    %v1111 = vmul.f32 %v1110, 2.1237322e-06
    %v1112 = vadd.f32 %v1111, 0.00028619796
    %v1113 = vmul.f32 %v1110, %v1112
    %v1114 = vadd.f32 %v1113, 0.0036580483
    %v1115 = vmul.f32 %v1110, %v1114
    %v1116 = vadd.f32 %v1115, 0.05243302
    %v1117 = vmul.f32 %v1110, %v1116
    %v1118 = vadd.f32 %v1117, 0.18741608
    %v1119 = vmul.f32 %v1110, %v1118
    %v1120 = vadd.f32 %v1119, 1.1283791
    %v1121 = vmul.f32 %v258, %v1120
    %v1122 = vmul.f32 %v1110, 3.8918573e-05
    %v1123 = vadd.f32 %v1122, 0.001143296
    %v1124 = vmul.f32 %v1110, %v1123
    %v1125 = vadd.f32 %v1124, 0.014752088
    %v1126 = vmul.f32 %v1110, %v1125
    %v1127 = vadd.f32 %v1126, 0.112945676
    %v1128 = vmul.f32 %v1110, %v1127
    %v1129 = vadd.f32 %v1128, 0.4994258
    %v1130 = vmul.f32 %v1110, %v1129
    %v1131 = vadd.f32 %v1130, 1.0
    %v1132 = vrcp.pop %v1131
    %v1133 = vmul.f32 %v1131, %v1132
    %v1134 = vsub.f32 1.0, %v1133
    %v1135 = vmul.f32 %v1132, %v1134
    %v1136 = vadd.f32 %v1132, %v1135
    %vm1137 = vweird.f32 %v1131
    %vm1138 = vweird.f32 %v1132
    %vm1139 = vmor %vm1137, %vm1138
    %v1140 = vsel %vm1139, %v1132, %v1136
    %v1141 = vand.u32 2147483647, %v1131
    %vm1142 = vcmp.eq.f32.partialorder %v1141, 8.507059e+37
    %v1143 = vand.u32 %v1131, 2147483648
    %v1144 = vor.u32 1.1754944e-38, %v1143
    %v1145 = vsel %vm1142, %v1144, %v1140
    %v1146 = vmul.f32 %v1121, %v1145
    %v1147 = vmin.f32 %v1146, 1.0
    %v1148 = vmax.f32 %v1147, -1.0
    %v1149 = vmul.f32 %v259, %v259
    %v1150 = vmin.f32 16.0, %v1149
    %v1151 = vmul.f32 %v1150, 2.1237322e-06
    %v1152 = vadd.f32 %v1151, 0.00028619796
    %v1153 = vmul.f32 %v1150, %v1152
    %v1154 = vadd.f32 %v1153, 0.0036580483
    %v1155 = vmul.f32 %v1150, %v1154
    %v1156 = vadd.f32 %v1155, 0.05243302
    %v1157 = vmul.f32 %v1150, %v1156
    %v1158 = vadd.f32 %v1157, 0.18741608
    %v1159 = vmul.f32 %v1150, %v1158
    %v1160 = vadd.f32 %v1159, 1.1283791
    %v1161 = vmul.f32 %v259, %v1160
    %v1162 = vmul.f32 %v1150, 3.8918573e-05
    %v1163 = vadd.f32 %v1162, 0.001143296
    %v1164 = vmul.f32 %v1150, %v1163
    %v1165 = vadd.f32 %v1164, 0.014752088
    %v1166 = vmul.f32 %v1150, %v1165
    %v1167 = vadd.f32 %v1166, 0.112945676
    %v1168 = vmul.f32 %v1150, %v1167
    %v1169 = vadd.f32 %v1168, 0.4994258
    %v1170 = vmul.f32 %v1150, %v1169
    %v1171 = vadd.f32 %v1170, 1.0
    %v1172 = vrcp.pop %v1171
    %v1173 = vmul.f32 %v1171, %v1172
    %v1174 = vsub.f32 1.0, %v1173
    %v1175 = vmul.f32 %v1172, %v1174
    %v1176 = vadd.f32 %v1172, %v1175
    %vm1177 = vweird.f32 %v1171
    %vm1178 = vweird.f32 %v1172
    %vm1179 = vmor %vm1177, %vm1178
    %v1180 = vsel %vm1179, %v1172, %v1176
    %v1181 = vand.u32 2147483647, %v1171
    %vm1182 = vcmp.eq.f32.partialorder %v1181, 8.507059e+37
    %v1183 = vand.u32 %v1171, 2147483648
    %v1184 = vor.u32 1.1754944e-38, %v1183
    %v1185 = vsel %vm1182, %v1184, %v1180
    %v1186 = vmul.f32 %v1161, %v1185
    %v1187 = vmin.f32 %v1186, 1.0
    %v1188 = vmax.f32 %v1187, -1.0
    %v1189 = vmul.f32 %v260, %v260
    %v1190 = vmin.f32 16.0, %v1189
    %v1191 = vmul.f32 %v1190, 2.1237322e-06
    %v1192 = vadd.f32 %v1191, 0.00028619796
    %v1193 = vmul.f32 %v1190, %v1192
    %v1194 = vadd.f32 %v1193, 0.0036580483
    %v1195 = vmul.f32 %v1190, %v1194
    %v1196 = vadd.f32 %v1195, 0.05243302
    %v1197 = vmul.f32 %v1190, %v1196
    %v1198 = vadd.f32 %v1197, 0.18741608
    %v1199 = vmul.f32 %v1190, %v1198
    %v1200 = vadd.f32 %v1199, 1.1283791
    %v1201 = vmul.f32 %v260, %v1200
    %v1202 = vmul.f32 %v1190, 3.8918573e-05
    %v1203 = vadd.f32 %v1202, 0.001143296
    %v1204 = vmul.f32 %v1190, %v1203
    %v1205 = vadd.f32 %v1204, 0.014752088
    %v1206 = vmul.f32 %v1190, %v1205
    %v1207 = vadd.f32 %v1206, 0.112945676
    %v1208 = vmul.f32 %v1190, %v1207
    %v1209 = vadd.f32 %v1208, 0.4994258
    %v1210 = vmul.f32 %v1190, %v1209
    %v1211 = vadd.f32 %v1210, 1.0
    %v1212 = vrcp.pop %v1211
    %v1213 = vmul.f32 %v1211, %v1212
    %v1214 = vsub.f32 1.0, %v1213
    %v1215 = vmul.f32 %v1212, %v1214
    %v1216 = vadd.f32 %v1212, %v1215
    %vm1217 = vweird.f32 %v1211
    %vm1218 = vweird.f32 %v1212
    %vm1219 = vmor %vm1217, %vm1218
    %v1220 = vsel %vm1219, %v1212, %v1216
    %v1221 = vand.u32 2147483647, %v1211
    %vm1222 = vcmp.eq.f32.partialorder %v1221, 8.507059e+37
    %v1223 = vand.u32 %v1211, 2147483648
    %v1224 = vor.u32 1.1754944e-38, %v1223
    %v1225 = vsel %vm1222, %v1224, %v1220
    %v1226 = vmul.f32 %v1201, %v1225
    %v1227 = vmin.f32 %v1226, 1.0
    %v1228 = vmax.f32 %v1227, -1.0
    %v1229 = vmul.f32 %v261, %v261
    %v1230 = vmin.f32 16.0, %v1229
    %v1231 = vmul.f32 %v1230, 2.1237322e-06
    %v1232 = vadd.f32 %v1231, 0.00028619796
    %v1233 = vmul.f32 %v1230, %v1232
    %v1234 = vadd.f32 %v1233, 0.0036580483
    %v1235 = vmul.f32 %v1230, %v1234
    %v1236 = vadd.f32 %v1235, 0.05243302
    %v1237 = vmul.f32 %v1230, %v1236
    %v1238 = vadd.f32 %v1237, 0.18741608
    %v1239 = vmul.f32 %v1230, %v1238
    %v1240 = vadd.f32 %v1239, 1.1283791
    %v1241 = vmul.f32 %v261, %v1240
    %v1242 = vmul.f32 %v1230, 3.8918573e-05
    %v1243 = vadd.f32 %v1242, 0.001143296
    %v1244 = vmul.f32 %v1230, %v1243
    %v1245 = vadd.f32 %v1244, 0.014752088
    %v1246 = vmul.f32 %v1230, %v1245
    %v1247 = vadd.f32 %v1246, 0.112945676
    %v1248 = vmul.f32 %v1230, %v1247
    %v1249 = vadd.f32 %v1248, 0.4994258
    %v1250 = vmul.f32 %v1230, %v1249
    %v1251 = vadd.f32 %v1250, 1.0
    %v1252 = vrcp.pop %v1251
    %v1253 = vmul.f32 %v1251, %v1252
    %v1254 = vsub.f32 1.0, %v1253
    %v1255 = vmul.f32 %v1252, %v1254
    %v1256 = vadd.f32 %v1252, %v1255
    %vm1257 = vweird.f32 %v1251
    %vm1258 = vweird.f32 %v1252
    %vm1259 = vmor %vm1257, %vm1258
    %v1260 = vsel %vm1259, %v1252, %v1256
    %v1261 = vand.u32 2147483647, %v1251
    %vm1262 = vcmp.eq.f32.partialorder %v1261, 8.507059e+37
    %v1263 = vand.u32 %v1251, 2147483648
    %v1264 = vor.u32 1.1754944e-38, %v1263
    %v1265 = vsel %vm1262, %v1264, %v1260
    %v1266 = vmul.f32 %v1241, %v1265
    %v1267 = vmin.f32 %v1266, 1.0
    %v1268 = vmax.f32 %v1267, -1.0
    %v1269 = vmul.f32 %v262, %v262
    %v1270 = vmin.f32 16.0, %v1269
    %v1271 = vmul.f32 %v1270, 2.1237322e-06
    %v1272 = vadd.f32 %v1271, 0.00028619796
    %v1273 = vmul.f32 %v1270, %v1272
    %v1274 = vadd.f32 %v1273, 0.0036580483
    %v1275 = vmul.f32 %v1270, %v1274
    %v1276 = vadd.f32 %v1275, 0.05243302
    %v1277 = vmul.f32 %v1270, %v1276
    %v1278 = vadd.f32 %v1277, 0.18741608
    %v1279 = vmul.f32 %v1270, %v1278
    %v1280 = vadd.f32 %v1279, 1.1283791
    %v1281 = vmul.f32 %v262, %v1280
    %v1282 = vmul.f32 %v1270, 3.8918573e-05
    %v1283 = vadd.f32 %v1282, 0.001143296
    %v1284 = vmul.f32 %v1270, %v1283
    %v1285 = vadd.f32 %v1284, 0.014752088
    %v1286 = vmul.f32 %v1270, %v1285
    %v1287 = vadd.f32 %v1286, 0.112945676
    %v1288 = vmul.f32 %v1270, %v1287
    %v1289 = vadd.f32 %v1288, 0.4994258
    %v1290 = vmul.f32 %v1270, %v1289
    %v1291 = vadd.f32 %v1290, 1.0
    %v1292 = vrcp.pop %v1291
    %v1293 = vmul.f32 %v1291, %v1292
    %v1294 = vsub.f32 1.0, %v1293
    %v1295 = vmul.f32 %v1292, %v1294
    %v1296 = vadd.f32 %v1292, %v1295
    %vm1297 = vweird.f32 %v1291
    %vm1298 = vweird.f32 %v1292
    %vm1299 = vmor %vm1297, %vm1298
    %v1300 = vsel %vm1299, %v1292, %v1296
    %v1301 = vand.u32 2147483647, %v1291
    %vm1302 = vcmp.eq.f32.partialorder %v1301, 8.507059e+37
    %v1303 = vand.u32 %v1291, 2147483648
    %v1304 = vor.u32 1.1754944e-38, %v1303
    %v1305 = vsel %vm1302, %v1304, %v1300
    %v1306 = vmul.f32 %v1281, %v1305
    %v1307 = vmin.f32 %v1306, 1.0
    %v1308 = vmax.f32 %v1307, -1.0
    %v1309 = vmul.f32 %v263, %v263
    %v1310 = vmin.f32 16.0, %v1309
    %v1311 = vmul.f32 %v1310, 2.1237322e-06
    %v1312 = vadd.f32 %v1311, 0.00028619796
    %v1313 = vmul.f32 %v1310, %v1312
    %v1314 = vadd.f32 %v1313, 0.0036580483
    %v1315 = vmul.f32 %v1310, %v1314
    %v1316 = vadd.f32 %v1315, 0.05243302
    %v1317 = vmul.f32 %v1310, %v1316
    %v1318 = vadd.f32 %v1317, 0.18741608
    %v1319 = vmul.f32 %v1310, %v1318
    %v1320 = vadd.f32 %v1319, 1.1283791
    %v1321 = vmul.f32 %v263, %v1320
    %v1322 = vmul.f32 %v1310, 3.8918573e-05
    %v1323 = vadd.f32 %v1322, 0.001143296
    %v1324 = vmul.f32 %v1310, %v1323
    %v1325 = vadd.f32 %v1324, 0.014752088
    %v1326 = vmul.f32 %v1310, %v1325
    %v1327 = vadd.f32 %v1326, 0.112945676
    %v1328 = vmul.f32 %v1310, %v1327
    %v1329 = vadd.f32 %v1328, 0.4994258
    %v1330 = vmul.f32 %v1310, %v1329
    %v1331 = vadd.f32 %v1330, 1.0
    %v1332 = vrcp.pop %v1331
    %v1333 = vmul.f32 %v1331, %v1332
    %v1334 = vsub.f32 1.0, %v1333
    %v1335 = vmul.f32 %v1332, %v1334
    %v1336 = vadd.f32 %v1332, %v1335
    %vm1337 = vweird.f32 %v1331
    %vm1338 = vweird.f32 %v1332
    %vm1339 = vmor %vm1337, %vm1338
    %v1340 = vsel %vm1339, %v1332, %v1336
    %v1341 = vand.u32 2147483647, %v1331
    %vm1342 = vcmp.eq.f32.partialorder %v1341, 8.507059e+37
    %v1343 = vand.u32 %v1331, 2147483648
    %v1344 = vor.u32 1.1754944e-38, %v1343
    %v1345 = vsel %vm1342, %v1344, %v1340
    %v1346 = vmul.f32 %v1321, %v1345
    %v1347 = vmin.f32 %v1346, 1.0
    %v1348 = vmax.f32 %v1347, -1.0
    %v1349 = vmul.f32 %v264, %v264
    %v1350 = vmin.f32 16.0, %v1349
    %v1351 = vmul.f32 %v1350, 2.1237322e-06
    %v1352 = vadd.f32 %v1351, 0.00028619796
    %v1353 = vmul.f32 %v1350, %v1352
    %v1354 = vadd.f32 %v1353, 0.0036580483
    %v1355 = vmul.f32 %v1350, %v1354
    %v1356 = vadd.f32 %v1355, 0.05243302
    %v1357 = vmul.f32 %v1350, %v1356
    %v1358 = vadd.f32 %v1357, 0.18741608
    %v1359 = vmul.f32 %v1350, %v1358
    %v1360 = vadd.f32 %v1359, 1.1283791
    %v1361 = vmul.f32 %v264, %v1360
    %v1362 = vmul.f32 %v1350, 3.8918573e-05
    %v1363 = vadd.f32 %v1362, 0.001143296
    %v1364 = vmul.f32 %v1350, %v1363
    %v1365 = vadd.f32 %v1364, 0.014752088
    %v1366 = vmul.f32 %v1350, %v1365
    %v1367 = vadd.f32 %v1366, 0.112945676
    %v1368 = vmul.f32 %v1350, %v1367
    %v1369 = vadd.f32 %v1368, 0.4994258
    %v1370 = vmul.f32 %v1350, %v1369
    %v1371 = vadd.f32 %v1370, 1.0
    %v1372 = vrcp.pop %v1371
    %v1373 = vmul.f32 %v1371, %v1372
    %v1374 = vsub.f32 1.0, %v1373
    %v1375 = vmul.f32 %v1372, %v1374
    %v1376 = vadd.f32 %v1372, %v1375
    %vm1377 = vweird.f32 %v1371
    %vm1378 = vweird.f32 %v1372
    %vm1379 = vmor %vm1377, %vm1378
    %v1380 = vsel %vm1379, %v1372, %v1376
    %v1381 = vand.u32 2147483647, %v1371
    %vm1382 = vcmp.eq.f32.partialorder %v1381, 8.507059e+37
    %v1383 = vand.u32 %v1371, 2147483648
    %v1384 = vor.u32 1.1754944e-38, %v1383
    %v1385 = vsel %vm1382, %v1384, %v1380
    %v1386 = vmul.f32 %v1361, %v1385
    %v1387 = vmin.f32 %v1386, 1.0
    %v1388 = vmax.f32 %v1387, -1.0
    %v1389 = vmul.f32 %v265, %v265
    %v1390 = vmin.f32 16.0, %v1389
    %v1391 = vmul.f32 %v1390, 2.1237322e-06
    %v1392 = vadd.f32 %v1391, 0.00028619796
    %v1393 = vmul.f32 %v1390, %v1392
    %v1394 = vadd.f32 %v1393, 0.0036580483
    %v1395 = vmul.f32 %v1390, %v1394
    %v1396 = vadd.f32 %v1395, 0.05243302
    %v1397 = vmul.f32 %v1390, %v1396
    %v1398 = vadd.f32 %v1397, 0.18741608
    %v1399 = vmul.f32 %v1390, %v1398
    %v1400 = vadd.f32 %v1399, 1.1283791
    %v1401 = vmul.f32 %v265, %v1400
    %v1402 = vmul.f32 %v1390, 3.8918573e-05
    %v1403 = vadd.f32 %v1402, 0.001143296
    %v1404 = vmul.f32 %v1390, %v1403
    %v1405 = vadd.f32 %v1404, 0.014752088
    %v1406 = vmul.f32 %v1390, %v1405
    %v1407 = vadd.f32 %v1406, 0.112945676
    %v1408 = vmul.f32 %v1390, %v1407
    %v1409 = vadd.f32 %v1408, 0.4994258
    %v1410 = vmul.f32 %v1390, %v1409
    %v1411 = vadd.f32 %v1410, 1.0
    %v1412 = vrcp.pop %v1411
    %v1413 = vmul.f32 %v1411, %v1412
    %v1414 = vsub.f32 1.0, %v1413
    %v1415 = vmul.f32 %v1412, %v1414
    %v1416 = vadd.f32 %v1412, %v1415
    %vm1417 = vweird.f32 %v1411
    %vm1418 = vweird.f32 %v1412
    %vm1419 = vmor %vm1417, %vm1418
    %v1420 = vsel %vm1419, %v1412, %v1416
    %v1421 = vand.u32 2147483647, %v1411
    %vm1422 = vcmp.eq.f32.partialorder %v1421, 8.507059e+37
    %v1423 = vand.u32 %v1411, 2147483648
    %v1424 = vor.u32 1.1754944e-38, %v1423
    %v1425 = vsel %vm1422, %v1424, %v1420
    %v1426 = vmul.f32 %v1401, %v1425
    %v1427 = vmin.f32 %v1426, 1.0
    %v1428 = vmax.f32 %v1427, -1.0
    %v1429 = vmul.f32 %v266, %v266
    %v1430 = vmin.f32 16.0, %v1429
    %v1431 = vmul.f32 %v1430, 2.1237322e-06
    %v1432 = vadd.f32 %v1431, 0.00028619796
    %v1433 = vmul.f32 %v1430, %v1432
    %v1434 = vadd.f32 %v1433, 0.0036580483
    %v1435 = vmul.f32 %v1430, %v1434
    %v1436 = vadd.f32 %v1435, 0.05243302
    %v1437 = vmul.f32 %v1430, %v1436
    %v1438 = vadd.f32 %v1437, 0.18741608
    %v1439 = vmul.f32 %v1430, %v1438
    %v1440 = vadd.f32 %v1439, 1.1283791
    %v1441 = vmul.f32 %v266, %v1440
    %v1442 = vmul.f32 %v1430, 3.8918573e-05
    %v1443 = vadd.f32 %v1442, 0.001143296
    %v1444 = vmul.f32 %v1430, %v1443
    %v1445 = vadd.f32 %v1444, 0.014752088
    %v1446 = vmul.f32 %v1430, %v1445
    %v1447 = vadd.f32 %v1446, 0.112945676
    %v1448 = vmul.f32 %v1430, %v1447
    %v1449 = vadd.f32 %v1448, 0.4994258
    %v1450 = vmul.f32 %v1430, %v1449
    %v1451 = vadd.f32 %v1450, 1.0
    %v1452 = vrcp.pop %v1451
    %v1453 = vmul.f32 %v1451, %v1452
    %v1454 = vsub.f32 1.0, %v1453
    %v1455 = vmul.f32 %v1452, %v1454
    %v1456 = vadd.f32 %v1452, %v1455
    %vm1457 = vweird.f32 %v1451
    %vm1458 = vweird.f32 %v1452
    %vm1459 = vmor %vm1457, %vm1458
    %v1460 = vsel %vm1459, %v1452, %v1456
    %v1461 = vand.u32 2147483647, %v1451
    %vm1462 = vcmp.eq.f32.partialorder %v1461, 8.507059e+37
    %v1463 = vand.u32 %v1451, 2147483648
    %v1464 = vor.u32 1.1754944e-38, %v1463
    %v1465 = vsel %vm1462, %v1464, %v1460
    %v1466 = vmul.f32 %v1441, %v1465
    %v1467 = vmin.f32 %v1466, 1.0
    %v1468 = vmax.f32 %v1467, -1.0
    %v1469 = vmul.f32 %v267, %v267
    %v1470 = vmin.f32 16.0, %v1469
    %v1471 = vmul.f32 %v1470, 2.1237322e-06
    %v1472 = vadd.f32 %v1471, 0.00028619796
    %v1473 = vmul.f32 %v1470, %v1472
    %v1474 = vadd.f32 %v1473, 0.0036580483
    %v1475 = vmul.f32 %v1470, %v1474
    %v1476 = vadd.f32 %v1475, 0.05243302
    %v1477 = vmul.f32 %v1470, %v1476
    %v1478 = vadd.f32 %v1477, 0.18741608
    %v1479 = vmul.f32 %v1470, %v1478
    %v1480 = vadd.f32 %v1479, 1.1283791
    %v1481 = vmul.f32 %v267, %v1480
    %v1482 = vmul.f32 %v1470, 3.8918573e-05
    %v1483 = vadd.f32 %v1482, 0.001143296
    %v1484 = vmul.f32 %v1470, %v1483
    %v1485 = vadd.f32 %v1484, 0.014752088
    %v1486 = vmul.f32 %v1470, %v1485
    %v1487 = vadd.f32 %v1486, 0.112945676
    %v1488 = vmul.f32 %v1470, %v1487
    %v1489 = vadd.f32 %v1488, 0.4994258
    %v1490 = vmul.f32 %v1470, %v1489
    %v1491 = vadd.f32 %v1490, 1.0
    %v1492 = vrcp.pop %v1491
    %v1493 = vmul.f32 %v1491, %v1492
    %v1494 = vsub.f32 1.0, %v1493
    %v1495 = vmul.f32 %v1492, %v1494
    %v1496 = vadd.f32 %v1492, %v1495
    %vm1497 = vweird.f32 %v1491
    %vm1498 = vweird.f32 %v1492
    %vm1499 = vmor %vm1497, %vm1498
    %v1500 = vsel %vm1499, %v1492, %v1496
    %v1501 = vand.u32 2147483647, %v1491
    %vm1502 = vcmp.eq.f32.partialorder %v1501, 8.507059e+37
    %v1503 = vand.u32 %v1491, 2147483648
    %v1504 = vor.u32 1.1754944e-38, %v1503
    %v1505 = vsel %vm1502, %v1504, %v1500
    %v1506 = vmul.f32 %v1481, %v1505
    %v1507 = vmin.f32 %v1506, 1.0
    %v1508 = vmax.f32 %v1507, -1.0
    %v1509 = vmul.f32 %v268, %v268
    %v1510 = vmin.f32 16.0, %v1509
    %v1511 = vmul.f32 %v1510, 2.1237322e-06
    %v1512 = vadd.f32 %v1511, 0.00028619796
    %v1513 = vmul.f32 %v1510, %v1512
    %v1514 = vadd.f32 %v1513, 0.0036580483
    %v1515 = vmul.f32 %v1510, %v1514
    %v1516 = vadd.f32 %v1515, 0.05243302
    %v1517 = vmul.f32 %v1510, %v1516
    %v1518 = vadd.f32 %v1517, 0.18741608
    %v1519 = vmul.f32 %v1510, %v1518
    %v1520 = vadd.f32 %v1519, 1.1283791
    %v1521 = vmul.f32 %v268, %v1520
    %v1522 = vmul.f32 %v1510, 3.8918573e-05
    %v1523 = vadd.f32 %v1522, 0.001143296
    %v1524 = vmul.f32 %v1510, %v1523
    %v1525 = vadd.f32 %v1524, 0.014752088
    %v1526 = vmul.f32 %v1510, %v1525
    %v1527 = vadd.f32 %v1526, 0.112945676
    %v1528 = vmul.f32 %v1510, %v1527
    %v1529 = vadd.f32 %v1528, 0.4994258
    %v1530 = vmul.f32 %v1510, %v1529
    %v1531 = vadd.f32 %v1530, 1.0
    %v1532 = vrcp.pop %v1531
    %v1533 = vmul.f32 %v1531, %v1532
    %v1534 = vsub.f32 1.0, %v1533
    %v1535 = vmul.f32 %v1532, %v1534
    %v1536 = vadd.f32 %v1532, %v1535
    %vm1537 = vweird.f32 %v1531
    %vm1538 = vweird.f32 %v1532
    %vm1539 = vmor %vm1537, %vm1538
    %v1540 = vsel %vm1539, %v1532, %v1536
    %v1541 = vand.u32 2147483647, %v1531
    %vm1542 = vcmp.eq.f32.partialorder %v1541, 8.507059e+37
    %v1543 = vand.u32 %v1531, 2147483648
    %v1544 = vor.u32 1.1754944e-38, %v1543
    %v1545 = vsel %vm1542, %v1544, %v1540
    %v1546 = vmul.f32 %v1521, %v1545
    %v1547 = vmin.f32 %v1546, 1.0
    %v1548 = vmax.f32 %v1547, -1.0
    %v1549 = vadd.f32 %v308, 1.0
    %v1550 = vadd.f32 %v348, 1.0
    %v1551 = vadd.f32 %v388, 1.0
    %v1552 = vadd.f32 %v428, 1.0
    %v1553 = vadd.f32 %v468, 1.0
    %v1554 = vadd.f32 %v508, 1.0
    %v1555 = vadd.f32 %v548, 1.0
    %v1556 = vadd.f32 %v588, 1.0
    %v1557 = vadd.f32 %v628, 1.0
    %v1558 = vadd.f32 %v668, 1.0
    %v1559 = vadd.f32 %v708, 1.0
    %v1560 = vadd.f32 %v748, 1.0
    %v1561 = vadd.f32 %v788, 1.0
    %v1562 = vadd.f32 %v828, 1.0
    %v1563 = vadd.f32 %v868, 1.0
    %v1564 = vadd.f32 %v908, 1.0
    %v1565 = vadd.f32 %v948, 1.0
    %v1566 = vadd.f32 %v988, 1.0
    %v1567 = vadd.f32 %v1028, 1.0
    %v1568 = vadd.f32 %v1068, 1.0
    %v1569 = vadd.f32 %v1108, 1.0
    %v1570 = vadd.f32 %v1148, 1.0
    %v1571 = vadd.f32 %v1188, 1.0
    %v1572 = vadd.f32 %v1228, 1.0
    %v1573 = vadd.f32 %v1268, 1.0
    %v1574 = vadd.f32 %v1308, 1.0
    %v1575 = vadd.f32 %v1348, 1.0
    %v1576 = vadd.f32 %v1388, 1.0
    %v1577 = vadd.f32 %v1428, 1.0
    %v1578 = vadd.f32 %v1468, 1.0
    %v1579 = vadd.f32 %v1508, 1.0
    %v1580 = vadd.f32 %v1548, 1.0
    %v1581 = vmul.f32 %v205, %v1549
    %v1582 = vmul.f32 %v206, %v1550
    %v1583 = vmul.f32 %v207, %v1551
    %v1584 = vmul.f32 %v208, %v1552
    %v1585 = vmul.f32 %v209, %v1553
    %v1586 = vmul.f32 %v210, %v1554
    %v1587 = vmul.f32 %v211, %v1555
    %v1588 = vmul.f32 %v212, %v1556
    %v1589 = vmul.f32 %v213, %v1557
    %v1590 = vmul.f32 %v214, %v1558
    %v1591 = vmul.f32 %v215, %v1559
    %v1592 = vmul.f32 %v216, %v1560
    %v1593 = vmul.f32 %v217, %v1561
    %v1594 = vmul.f32 %v218, %v1562
    %v1595 = vmul.f32 %v219, %v1563
    %v1596 = vmul.f32 %v220, %v1564
    %v1597 = vmul.f32 %v221, %v1565
    %v1598 = vmul.f32 %v222, %v1566
    %v1599 = vmul.f32 %v223, %v1567
    %v1600 = vmul.f32 %v224, %v1568
    %v1601 = vmul.f32 %v225, %v1569
    %v1602 = vmul.f32 %v226, %v1570
    %v1603 = vmul.f32 %v227, %v1571
    %v1604 = vmul.f32 %v228, %v1572
    %v1605 = vmul.f32 %v229, %v1573
    %v1606 = vmul.f32 %v230, %v1574
    %v1607 = vmul.f32 %v231, %v1575
    %v1608 = vmul.f32 %v232, %v1576
    %v1609 = vmul.f32 %v233, %v1577
    %v1610 = vmul.f32 %v234, %v1578
    %v1611 = vmul.f32 %v235, %v1579
    %v1612 = vmul.f32 %v236, %v1580
    %v1613 = vld [vmem:[%s3] sm:$0xff]
    %v1614 = vld [vmem:[%s3 + $0x8] sm:$0xff]
    %v1615 = vld [vmem:[%s3 + $0x10] sm:$0xff]
    %v1616 = vld [vmem:[%s3 + $0x18] sm:$0xff]
    %v1617 = vld [vmem:[%s3 + $0x20] sm:$0xff]
    %v1618 = vld [vmem:[%s3 + $0x28] sm:$0xff]
    %v1619 = vld [vmem:[%s3 + $0x30] sm:$0xff]
    %v1620 = vld [vmem:[%s3 + $0x38] sm:$0xff]
    %v1621 = vld [vmem:[%s3 + $0x40] sm:$0xff]
    %v1622 = vld [vmem:[%s3 + $0x48] sm:$0xff]
    %v1623 = vld [vmem:[%s3 + $0x50] sm:$0xff]
    %v1624 = vld [vmem:[%s3 + $0x58] sm:$0xff]
    %v1625 = vld [vmem:[%s3 + $0x60] sm:$0xff]
    %v1626 = vld [vmem:[%s3 + $0x68] sm:$0xff]
    %v1627 = vld [vmem:[%s3 + $0x70] sm:$0xff]
    %v1628 = vld [vmem:[%s3 + $0x78] sm:$0xff]
    %v1629 = vld [vmem:[%s3 + $0x80] sm:$0xff]
    %v1630 = vld [vmem:[%s3 + $0x88] sm:$0xff]
    %v1631 = vld [vmem:[%s3 + $0x90] sm:$0xff]
    %v1632 = vld [vmem:[%s3 + $0x98] sm:$0xff]
    %v1633 = vld [vmem:[%s3 + $0xa0] sm:$0xff]
    %v1634 = vld [vmem:[%s3 + $0xa8] sm:$0xff]
    %v1635 = vld [vmem:[%s3 + $0xb0] sm:$0xff]
    %v1636 = vld [vmem:[%s3 + $0xb8] sm:$0xff]
    %v1637 = vld [vmem:[%s3 + $0xc0] sm:$0xff]
    %v1638 = vld [vmem:[%s3 + $0xc8] sm:$0xff]
    %v1639 = vld [vmem:[%s3 + $0xd0] sm:$0xff]
    %v1640 = vld [vmem:[%s3 + $0xd8] sm:$0xff]
    %v1641 = vld [vmem:[%s3 + $0xe0] sm:$0xff]
    %v1642 = vld [vmem:[%s3 + $0xe8] sm:$0xff]
    %v1643 = vld [vmem:[%s3 + $0xf0] sm:$0xff]
    %v1644 = vld [vmem:[%s3 + $0xf8] sm:$0xff]
    %v1645 = vld [vmem:[%s4] sm:$0x1]
    %v1647 = vperm.slane %v1645, 0
    %1649 = vmatpush.msra.mxu0 %v1628
    %1650 = vmatpush.msra.mxu0 %v1627
    %1651 = vmatpush.msra.mxu0 %v1626
    %1652 = vmatpush.msra.mxu0 %v1625
    %1653 = vmatpush.msra.mxu0 %v1624
    %1654 = vmatpush.msra.mxu0 %v1623
    %1655 = vmatpush.msra.mxu0 %v1622
    %1656 = vmatpush.msra.mxu0 %v1621
    %1657 = vmatpush.msra.mxu0 %v1620
    %1658 = vmatpush.msra.mxu0 %v1619
    %1659 = vmatpush.msra.mxu0 %v1618
    %1660 = vmatpush.msra.mxu0 %v1617
    %1661 = vmatpush.msra.mxu0 %v1616
    %1662 = vmatpush.msra.mxu0 %v1615
    %1663 = vmatpush.msra.mxu0 %v1614
    %1664 = vmatpush.msra.mxu0 %v1613
    %1665 = vmatmul.f32.gmra.mxu0 %v1581
    %v1666 = vpop.f32.mrf.mxu0
    %v1667 = vadd.f32 %v1647, %v1666
    %1668 = vmatmul.f32.gmra.mxu0 %v1583
    %v1669 = vpop.f32.mrf.mxu0
    %v1670 = vadd.f32 %v1647, %v1669
    %1671 = vmatmul.f32.gmra.mxu0 %v1585
    %v1672 = vpop.f32.mrf.mxu0
    %v1673 = vadd.f32 %v1647, %v1672
    %1674 = vmatmul.f32.gmra.mxu0 %v1587
    %v1675 = vpop.f32.mrf.mxu0
    %v1676 = vadd.f32 %v1647, %v1675
    %1677 = vmatmul.f32.gmra.mxu0 %v1589
    %v1678 = vpop.f32.mrf.mxu0
    %v1679 = vadd.f32 %v1647, %v1678
    %1680 = vmatmul.f32.gmra.mxu0 %v1591
    %v1681 = vpop.f32.mrf.mxu0
    %v1682 = vadd.f32 %v1647, %v1681
    %1683 = vmatmul.f32.gmra.mxu0 %v1593
    %v1684 = vpop.f32.mrf.mxu0
    %v1685 = vadd.f32 %v1647, %v1684
    %1686 = vmatmul.f32.gmra.mxu0 %v1595
    %v1687 = vpop.f32.mrf.mxu0
    %v1688 = vadd.f32 %v1647, %v1687
    %1689 = vmatmul.f32.gmra.mxu0 %v1597
    %v1690 = vpop.f32.mrf.mxu0
    %v1691 = vadd.f32 %v1647, %v1690
    %1692 = vmatmul.f32.gmra.mxu0 %v1599
    %v1693 = vpop.f32.mrf.mxu0
    %v1694 = vadd.f32 %v1647, %v1693
    %1695 = vmatmul.f32.gmra.mxu0 %v1601
    %v1696 = vpop.f32.mrf.mxu0
    %v1697 = vadd.f32 %v1647, %v1696
    %1698 = vmatmul.f32.gmra.mxu0 %v1603
    %v1699 = vpop.f32.mrf.mxu0
    %v1700 = vadd.f32 %v1647, %v1699
    %1701 = vmatmul.f32.gmra.mxu0 %v1605
    %v1702 = vpop.f32.mrf.mxu0
    %v1703 = vadd.f32 %v1647, %v1702
    %1704 = vmatmul.f32.gmra.mxu0 %v1607
    %v1705 = vpop.f32.mrf.mxu0
    %v1706 = vadd.f32 %v1647, %v1705
    %1707 = vmatmul.f32.gmra.mxu0 %v1609
    %v1708 = vpop.f32.mrf.mxu0
    %v1709 = vadd.f32 %v1647, %v1708
    %1710 = vmatmul.f32.gmra.mxu0 %v1611
    %v1711 = vpop.f32.mrf.mxu0
    %v1712 = vadd.f32 %v1647, %v1711
    %1713 = vdwg.mxu0
    %1714 = vmatpush.msra.mxu0 %v1644
    %1715 = vmatpush.msra.mxu0 %v1643
    %1716 = vmatpush.msra.mxu0 %v1642
    %1717 = vmatpush.msra.mxu0 %v1641
    %1718 = vmatpush.msra.mxu0 %v1640
    %1719 = vmatpush.msra.mxu0 %v1639
    %1720 = vmatpush.msra.mxu0 %v1638
    %1721 = vmatpush.msra.mxu0 %v1637
    %1722 = vmatpush.msra.mxu0 %v1636
    %1723 = vmatpush.msra.mxu0 %v1635
    %1724 = vmatpush.msra.mxu0 %v1634
    %1725 = vmatpush.msra.mxu0 %v1633
    %1726 = vmatpush.msra.mxu0 %v1632
    %1727 = vmatpush.msra.mxu0 %v1631
    %1728 = vmatpush.msra.mxu0 %v1630
    %1729 = vmatpush.msra.mxu0 %v1629
    %1730 = vmatmul.f32.gmra.mxu0 %v1582
    %v1731 = vpop.f32.mrf.mxu0
    %v1732 = vadd.f32 %v1667, %v1731
    %1733 = vmatmul.f32.gmra.mxu0 %v1584
    %v1734 = vpop.f32.mrf.mxu0
    %v1735 = vadd.f32 %v1670, %v1734
    %1736 = vmatmul.f32.gmra.mxu0 %v1586
    %v1737 = vpop.f32.mrf.mxu0
    %v1738 = vadd.f32 %v1673, %v1737
    %1739 = vmatmul.f32.gmra.mxu0 %v1588
    %v1740 = vpop.f32.mrf.mxu0
    %v1741 = vadd.f32 %v1676, %v1740
    %1742 = vmatmul.f32.gmra.mxu0 %v1590
    %v1743 = vpop.f32.mrf.mxu0
    %v1744 = vadd.f32 %v1679, %v1743
    %1745 = vmatmul.f32.gmra.mxu0 %v1592
    %v1746 = vpop.f32.mrf.mxu0
    %v1747 = vadd.f32 %v1682, %v1746
    %1748 = vmatmul.f32.gmra.mxu0 %v1594
    %v1749 = vpop.f32.mrf.mxu0
    %v1750 = vadd.f32 %v1685, %v1749
    %1751 = vmatmul.f32.gmra.mxu0 %v1596
    %v1752 = vpop.f32.mrf.mxu0
    %v1753 = vadd.f32 %v1688, %v1752
    %1754 = vmatmul.f32.gmra.mxu0 %v1598
    %v1755 = vpop.f32.mrf.mxu0
    %v1756 = vadd.f32 %v1691, %v1755
    %1757 = vmatmul.f32.gmra.mxu0 %v1600
    %v1758 = vpop.f32.mrf.mxu0
    %v1759 = vadd.f32 %v1694, %v1758
    %1760 = vmatmul.f32.gmra.mxu0 %v1602
    %v1761 = vpop.f32.mrf.mxu0
    %v1762 = vadd.f32 %v1697, %v1761
    %1763 = vmatmul.f32.gmra.mxu0 %v1604
    %v1764 = vpop.f32.mrf.mxu0
    %v1765 = vadd.f32 %v1700, %v1764
    %1766 = vmatmul.f32.gmra.mxu0 %v1606
    %v1767 = vpop.f32.mrf.mxu0
    %v1768 = vadd.f32 %v1703, %v1767
    %1769 = vmatmul.f32.gmra.mxu0 %v1608
    %v1770 = vpop.f32.mrf.mxu0
    %v1771 = vadd.f32 %v1706, %v1770
    %1772 = vmatmul.f32.gmra.mxu0 %v1610
    %v1773 = vpop.f32.mrf.mxu0
    %v1774 = vadd.f32 %v1709, %v1773
    %1775 = vmatmul.f32.gmra.mxu0 %v1612
    %v1776 = vpop.f32.mrf.mxu0
    %v1777 = vadd.f32 %v1712, %v1776
    %1778 = vdwg.mxu0
    %1779 = vst [vmem:[#allocation2] sm:$0xff] %v1732
    %1780 = vst [vmem:[#allocation2 + $0x8] sm:$0xff] %v1735
    %1781 = vst [vmem:[#allocation2 + $0x10] sm:$0xff] %v1738
    %1782 = vst [vmem:[#allocation2 + $0x18] sm:$0xff] %v1741
    %1783 = vst [vmem:[#allocation2 + $0x20] sm:$0xff] %v1744
    %1784 = vst [vmem:[#allocation2 + $0x28] sm:$0xff] %v1747
    %1785 = vst [vmem:[#allocation2 + $0x30] sm:$0xff] %v1750
    %1786 = vst [vmem:[#allocation2 + $0x38] sm:$0xff] %v1753
    %1787 = vst [vmem:[#allocation2 + $0x40] sm:$0xff] %v1756
    %1788 = vst [vmem:[#allocation2 + $0x48] sm:$0xff] %v1759
    %1789 = vst [vmem:[#allocation2 + $0x50] sm:$0xff] %v1762
    %1790 = vst [vmem:[#allocation2 + $0x58] sm:$0xff] %v1765
    %1791 = vst [vmem:[#allocation2 + $0x60] sm:$0xff] %v1768
    %1792 = vst [vmem:[#allocation2 + $0x68] sm:$0xff] %v1771
    %1793 = vst [vmem:[#allocation2 + $0x70] sm:$0xff] %v1774
    %1794 = vst [vmem:[#allocation2 + $0x78] sm:$0xff] %v1777
    // Predicated region
    $region22: #{mlp_forward.1} parent=1 // pred_check
      _
    $region23: #{mlp_forward.1} parent=1 // pred_check_branch
      %1796 = sbr.rel (0) target = $region25
    $region24: #{mlp_forward.1} parent=1 // pred_region
      %1798 = vsyncadd [#allocation3], 0
      %s1799 = sshll.u32 [#allocation2], 4
      %s1800 = int_to_ptr.vmem [resolvable:$true] %s1799
      %s1801 = sshll.u32 %s5, 4
      %s1802 = int_to_ptr.hbm [resolvable:$true] %s1801
      %1807 = dma.vmem_to_hbm [thread:$0]  %s1800, 2048, %s1802, [#allocation3], 128, 128, 8
    $region25: #{mlp_forward.1} parent=1 // pred_fallthru
      _
    // Predicated region
    $region26: #{mlp_forward.1} parent=1 // pred_check
      _
    $region27: #{mlp_forward.1} parent=1 // pred_check_branch
      %1809 = sbr.rel (0) target = $region29
    $region28: #{mlp_forward.1} parent=1 // pred_region
      %1811 = dma.done [#allocation3], 2048
    $region29: #{mlp_forward.1} parent=1 // pred_fallthru
      _
    %1812 = vsyncpa [#allocation3], 1

</llo_original>
